<compile_context>
chip_gen: v6e
topology: v6e:2x2x1
jax: 0.10.0
libtpu: 0.0.40
codegen_flags: <defaults>
</compile_context>

<pallas_src>
import functools

import jax
import jax.numpy as jnp
from jax.experimental import pallas as pl
from jax.experimental.pallas import tpu as pltpu

EPS = 1e-5
VMEM_LIMIT = 32 * 1024 * 1024   # explicit budget; fits v7x (64 MiB physical)


def _pick_row_tile(h2, w2, target_rows=1024):
    """Largest divisor of h2 whose row-tile has ~<= target_rows im2col rows."""
    th = max(1, min(h2, max(1, target_rows // max(w2, 1))))
    while h2 % th:
        th -= 1
    return th


def _im2col_3x3(xp, H, W):
    """xp: (H+2, W+2, C) zero-bordered tile -> (H*W, 9*C) patch matrix (bf16).

    Column order matches w.reshape(9*C, Cout) for w of shape (3, 3, C, Cout):
    flat index = (kh*3 + kw)*C + c.
    """
    C = xp.shape[-1]
    cols = jnp.concatenate(
        [xp[:, 0:W, :], xp[:, 1:W + 1, :], xp[:, 2:W + 2, :]], axis=-1)  # (H+2, W, 3C)
    rows = jnp.concatenate(
        [cols[0:H], cols[1:H + 1], cols[2:H + 2]], axis=-1)              # (H, W, 9C)
    return rows.reshape(H * W, 9 * C)


def _fill_pad_borders(pad_ref, TH, W, C):
    """Zero only the 1-wide border of the pad scratch (interior is overwritten)."""
    dt = pad_ref.dtype
    zcol = jnp.zeros((TH + 2, 1, C), dt)
    pad_ref[:, 0:1, :] = zcol
    pad_ref[:, W + 1:W + 2, :] = zcol
    zrow = jnp.zeros((1, W, C), dt)
    pad_ref[0:1, 1:W + 1, :] = zrow
    pad_ref[TH + 1:TH + 2, 1:W + 1, :] = zrow


def _conv1_kernel(xp_ref, w_ref, y_ref, st_ref, pad_ref, *, TH, W2, R):
    # xp_ref: (H2, W2, Cin) bf16 -- the whole pooled sample, resident in VMEM
    # across all row blocks of this sample (its block index ignores r).
    r = pl.program_id(1)
    row0 = pl.multiple_of(r * TH, TH)
    C = xp_ref.shape[-1]

    _fill_pad_borders(pad_ref, TH, W2, C)

    # Interior rows of this row block.
    pad_ref[1:TH + 1, 1:W2 + 1, :] = xp_ref[pl.ds(row0, TH), :, :]

    # Halo rows from neighbouring row blocks (stay zero at the image border).
    @pl.when(r > 0)
    def _():
        pad_ref[0:1, 1:W2 + 1, :] = xp_ref[pl.ds(row0 - 1, 1), :, :]

    @pl.when(r < R - 1)
    def _():
        pad_ref[TH + 1:TH + 2, 1:W2 + 1, :] = xp_ref[pl.ds(row0 + TH, 1), :, :]

    patches = _im2col_3x3(pad_ref[...], TH, W2)                 # (TH*W2, 9*Cin) bf16
    y = jnp.dot(patches, w_ref[...], preferred_element_type=jnp.float32)
    y_ref[...] = y.reshape(TH, W2, y.shape[-1]).astype(y_ref.dtype)
    # Per-tile BN1 partial statistics (f32, taken before the bf16 store).
    st_ref[...] = jnp.concatenate(
        [jnp.sum(y, axis=0, keepdims=True),
         jnp.sum(y * y, axis=0, keepdims=True)], axis=0)


def _conv2_kernel(y1_ref, s1_ref, t1_ref, w_ref, y2_ref, st_ref, pad_ref,
                  *, TH, W2, R):
    # y1_ref: (H2, W2, C1) bf16, whole sample resident.  s1/t1: (1, C1) f32
    # BN1 scale/shift (precomputed in the wrapper).
    r = pl.program_id(1)
    row0 = pl.multiple_of(r * TH, TH)
    C1 = y1_ref.shape[-1]
    scale = s1_ref[...]
    shift = t1_ref[...]

    def bn_relu(v):                                             # bf16 -> bf16
        h = v.astype(jnp.float32) * scale + shift
        return jnp.maximum(h, 0.0).astype(pad_ref.dtype)

    _fill_pad_borders(pad_ref, TH, W2, C1)

    pad_ref[1:TH + 1, 1:W2 + 1, :] = bn_relu(y1_ref[pl.ds(row0, TH), :, :])

    @pl.when(r > 0)
    def _():
        pad_ref[0:1, 1:W2 + 1, :] = bn_relu(y1_ref[pl.ds(row0 - 1, 1), :, :])

    @pl.when(r < R - 1)
    def _():
        pad_ref[TH + 1:TH + 2, 1:W2 + 1, :] = bn_relu(y1_ref[pl.ds(row0 + TH, 1), :, :])

    patches = _im2col_3x3(pad_ref[...], TH, W2)                 # (TH*W2, 9*C1) bf16
    y = jnp.dot(patches, w_ref[...], preferred_element_type=jnp.float32)
    y2_ref[...] = y.reshape(TH, W2, y.shape[-1]).astype(y2_ref.dtype)
    st_ref[...] = jnp.concatenate(
        [jnp.sum(y, axis=0, keepdims=True),
         jnp.sum(y * y, axis=0, keepdims=True)], axis=0)


def init_down_params(key, in_ch, out_ch):
    """Deterministic PyTorch-default-style init (weights as (kh, kw, Cin, Cout))."""
    ks = jax.random.split(key, 4)
    k1 = 1.0 / jnp.sqrt(in_ch * 9.0)
    w1 = jax.random.uniform(ks[0], (3, 3, in_ch, out_ch), jnp.float32, -k1, k1)
    b1 = jax.random.uniform(ks[1], (1, out_ch), jnp.float32, -k1, k1)
    k2 = 1.0 / jnp.sqrt(out_ch * 9.0)
    w2 = jax.random.uniform(ks[2], (3, 3, out_ch, out_ch), jnp.float32, -k2, k2)
    b2 = jax.random.uniform(ks[3], (1, out_ch), jnp.float32, -k2, k2)
    g1 = jnp.ones((1, out_ch), jnp.float32)
    be1 = jnp.zeros((1, out_ch), jnp.float32)
    g2 = jnp.ones((1, out_ch), jnp.float32)
    be2 = jnp.zeros((1, out_ch), jnp.float32)
    return (w1, b1, g1, be1, w2, b2, g2, be2)


def down_forward(x_nchw, params):
    """x_nchw: (N, Cin, H, W) f32, H and W even. Returns (N, Cout, H/2, W/2)."""
    # b1/b2 are unused in the kernels: a conv bias cancels exactly under the
    # following training-mode BatchNorm.
    w1, b1, g1, be1, w2, b2, g2, be2 = params
    N, Cin, H, W = x_nchw.shape
    assert H % 2 == 0 and W % 2 == 0
    H2, W2 = H // 2, W // 2
    C1 = w1.shape[-1]
    C2 = w2.shape[-1]
    TH = _pick_row_tile(H2, W2)          # row-block height (im2col M ~ 1024)
    R = H2 // TH
    cnt = float(N * H2 * W2)

    cparams = pltpu.CompilerParams(
        dimension_semantics=("parallel", "parallel"),
        vmem_limit_bytes=VMEM_LIMIT)

    # MaxPool2d(2) fused with the (required) NCHW->NHWC relayout + bf16 cast.
    # Writes a 4x-smaller slab than a plain transpose would.
    x = x_nchw.astype(jnp.float32)
    xp = jnp.max(x.reshape(N, Cin, H2, 2, W2, 2), axis=(3, 5))      # (N,Cin,H2,W2)
    xp = jnp.transpose(xp, (0, 2, 3, 1)).astype(jnp.bfloat16)       # (N,H2,W2,Cin)

    # 3x3 weights flattened to one (9*Cin, Cout) im2col contraction.
    w1f = w1.reshape(9 * Cin, C1).astype(jnp.bfloat16)
    w2f = w2.reshape(9 * C1, C2).astype(jnp.bfloat16)

    # ---- pass 1: conv1 over the pooled input; per-tile BN1 partial stats.
    y1, st1 = pl.pallas_call(
        functools.partial(_conv1_kernel, TH=TH, W2=W2, R=R),
        grid=(N, R),
        in_specs=[
            pl.BlockSpec((None, H2, W2, Cin), lambda n, r: (n, 0, 0, 0)),  # resident
            pl.BlockSpec((9 * Cin, C1), lambda n, r: (0, 0)),
        ],
        out_specs=(
            pl.BlockSpec((None, TH, W2, C1), lambda n, r: (n, r, 0, 0)),
            pl.BlockSpec((None, 2, C1), lambda n, r: (n * R + r, 0, 0)),
        ),
        out_shape=(
            jax.ShapeDtypeStruct((N, H2, W2, C1), jnp.bfloat16),
            jax.ShapeDtypeStruct((N * R, 2, C1), jnp.float32),
        ),
        scratch_shapes=[pltpu.VMEM((TH + 2, W2 + 2, Cin), jnp.bfloat16)],
        compiler_params=cparams,
    )(xp, w1f)

    # BN1 scale/shift finalized in the wrapper (O(N*R*C1) work; XLA fuses).
    s1 = jnp.sum(st1, axis=0)                                    # (2, C1)
    mu1 = s1[0] / cnt
    var1 = s1[1] / cnt - mu1 * mu1
    sc1 = g1[0] * jax.lax.rsqrt(var1 + EPS)
    sh1 = be1[0] - mu1 * sc1
    scale1 = sc1.reshape(1, C1).astype(jnp.float32)
    shift1 = sh1.reshape(1, C1).astype(jnp.float32)

    # ---- pass 2: BN1 + ReLU + conv2; per-tile BN2 partial stats.
    y2, st2 = pl.pallas_call(
        functools.partial(_conv2_kernel, TH=TH, W2=W2, R=R),
        grid=(N, R),
        in_specs=[
            pl.BlockSpec((None, H2, W2, C1), lambda n, r: (n, 0, 0, 0)),   # resident
            pl.BlockSpec((1, C1), lambda n, r: (0, 0)),
            pl.BlockSpec((1, C1), lambda n, r: (0, 0)),
            pl.BlockSpec((9 * C1, C2), lambda n, r: (0, 0)),
        ],
        out_specs=(
            pl.BlockSpec((None, TH, W2, C2), lambda n, r: (n, r, 0, 0)),
            pl.BlockSpec((None, 2, C2), lambda n, r: (n * R + r, 0, 0)),
        ),
        out_shape=(
            jax.ShapeDtypeStruct((N, H2, W2, C2), jnp.bfloat16),
            jax.ShapeDtypeStruct((N * R, 2, C2), jnp.float32),
        ),
        scratch_shapes=[pltpu.VMEM((TH + 2, W2 + 2, C1), jnp.bfloat16)],
        compiler_params=cparams,
    )(y1, scale1, shift1, w2f)

    # ---- BN2 + ReLU in the wrapper; XLA fuses it with the NHWC->NCHW transpose.
    s2 = jnp.sum(st2, axis=0)                                    # (2, C2)
    mu2 = s2[0] / cnt
    var2 = s2[1] / cnt - mu2 * mu2
    sc2 = g2[0] * jax.lax.rsqrt(var2 + EPS)
    sh2 = be2[0] - mu2 * sc2
    out = jnp.maximum(y2.astype(jnp.float32) * sc2 + sh2, 0.0)   # (N, H2, W2, C2)
    return jnp.transpose(out, (0, 3, 1, 2))                      # back to NCHW


def down_reference(x_nchw, params):
    """Pure-JAX f32 reference of the PyTorch module (training-mode BN, with bias)."""
    w1, b1, g1, be1, w2, b2, g2, be2 = params
    x = x_nchw.astype(jnp.float32)
    N, C, H, W = x.shape
    xp = jnp.max(x.reshape(N, C, H // 2, 2, W // 2, 2), axis=(3, 5))

    def conv_bn_relu(h, w, b, g, be):
        y = jax.lax.conv_general_dilated(
            h, jnp.transpose(w, (3, 2, 0, 1)), window_strides=(1, 1),
            padding=((1, 1), (1, 1)),
            dimension_numbers=("NCHW", "OIHW", "NCHW"))
        y = y + b.reshape(1, -1, 1, 1)
        mu = jnp.mean(y, axis=(0, 2, 3), keepdims=True)
        var = jnp.mean((y - mu) ** 2, axis=(0, 2, 3), keepdims=True)
        y = (y - mu) * jax.lax.rsqrt(var + EPS) * g.reshape(1, -1, 1, 1) \
            + be.reshape(1, -1, 1, 1)
        return jnp.maximum(y, 0.0)

    h = conv_bn_relu(xp, w1, b1, g1, be1)
    return conv_bn_relu(h, w2, b2, g2, be2)


if __name__ == "__main__":
    key = jax.random.PRNGKey(0)
    k_x, k_p = jax.random.split(key)

    N, IN_CH, OUT_CH, H, W = 2, 4, 8, 16, 16
    x = jax.random.normal(k_x, (N, IN_CH, H, W), jnp.float32)
    params = init_down_params(k_p, IN_CH, OUT_CH)

    out = jax.block_until_ready(jax.jit(down_forward)(x, params))
    assert out.shape == (N, OUT_CH, H // 2, W // 2), out.shape
    assert bool(jnp.all(jnp.isfinite(out))), "non-finite output"

    # Validate against the pure-JAX f32 reference (tolerance covers bf16 MXU
    # operands, bf16 intermediate activations, and one-pass variance).
    ref = jax.block_until_ready(jax.jit(down_reference)(x, params))
    err = float(jnp.max(jnp.abs(out - ref)))
    assert err < 2e-1, f"mismatch vs reference: max abs err = {err}"

    print("KERNEL_OK")
</pallas_src>

<mosaic_0001>
module attributes {stable_mosaic.version = 11 : i64} {
  func.func @_conv1_kernel(%arg0: i32, %arg1: i32, %arg2: memref<1x8x8x4xbf16, #tpu.memory_space<vmem>>, %arg3: memref<36x8xbf16, #tpu.memory_space<vmem>>, %arg4: memref<1x8x8x8xbf16, #tpu.memory_space<vmem>>, %arg5: memref<1x2x8xf32, #tpu.memory_space<vmem>>, %arg6: memref<10x10x4xbf16, #tpu.memory_space<vmem>>) attributes {dimension_semantics = [#tpu.dimension_semantics<parallel>, #tpu.dimension_semantics<parallel>], iteration_bounds = array<i64: 2, 1>, scalar_prefetch = 0 : i64, scratch_operands = 1 : i64, tpu.core_type = #tpu.core_type<tc>, window_params = [{transform_indices = @transform_0, window_bounds = array<i64: 1, 8, 8, 4>}, {pipeline_mode = #tpu.pipeline_mode<synchronous>, transform_indices = @transform_1, window_bounds = array<i64: 36, 8>}, {transform_indices = @transform_2, window_bounds = array<i64: 1, 8, 8, 8>}, {transform_indices = @transform_3, window_bounds = array<i64: 1, 2, 8>}]} {
    %c8_i32 = arith.constant 8 : i32
    %0 = arith.muli %arg1, %c8_i32 : i32
    %1 = tpu.assume_multiple %0, 8 : i32
    %cst = arith.constant 0.000000e+00 : bf16
    %2 = vector.broadcast %cst : bf16 to vector<10x1x4xbf16>
    %c0 = arith.constant 0 : index
    %c0_0 = arith.constant 0 : index
    %c0_1 = arith.constant 0 : index
    %3 = vector.load %arg6[%c0, %c0_0, %c0_1] : memref<10x10x4xbf16, #tpu.memory_space<vmem>>, vector<10x1x4xbf16>
    tpu.vector_store %arg6[%c0, %c0_0, %c0_1], %2 {strides = array<i32>} : memref<10x10x4xbf16, #tpu.memory_space<vmem>>, vector<10x1x4xbf16>,
    %c0_2 = arith.constant 0 : index
    %c9 = arith.constant 9 : index
    %c0_3 = arith.constant 0 : index
    %4 = vector.load %arg6[%c0_2, %c9, %c0_3] : memref<10x10x4xbf16, #tpu.memory_space<vmem>>, vector<10x1x4xbf16>
    tpu.vector_store %arg6[%c0_2, %c9, %c0_3], %2 {strides = array<i32>} : memref<10x10x4xbf16, #tpu.memory_space<vmem>>, vector<10x1x4xbf16>,
    %cst_4 = arith.constant 0.000000e+00 : bf16
    %5 = vector.broadcast %cst_4 : bf16 to vector<1x8x4xbf16>
    %c0_5 = arith.constant 0 : index
    %c1 = arith.constant 1 : index
    %c0_6 = arith.constant 0 : index
    %6 = vector.load %arg6[%c0_5, %c1, %c0_6] : memref<10x10x4xbf16, #tpu.memory_space<vmem>>, vector<1x8x4xbf16>
    tpu.vector_store %arg6[%c0_5, %c1, %c0_6], %5 {strides = array<i32>} : memref<10x10x4xbf16, #tpu.memory_space<vmem>>, vector<1x8x4xbf16>,
    %c9_7 = arith.constant 9 : index
    %c1_8 = arith.constant 1 : index
    %c0_9 = arith.constant 0 : index
    %7 = vector.load %arg6[%c9_7, %c1_8, %c0_9] : memref<10x10x4xbf16, #tpu.memory_space<vmem>>, vector<1x8x4xbf16>
    tpu.vector_store %arg6[%c9_7, %c1_8, %c0_9], %5 {strides = array<i32>} : memref<10x10x4xbf16, #tpu.memory_space<vmem>>, vector<1x8x4xbf16>,
    %c0_10 = arith.constant 0 : index
    %8 = arith.index_cast %1 : i32 to index
    %c0_11 = arith.constant 0 : index
    %c0_12 = arith.constant 0 : index
    %9 = vector.load %arg2[%c0_10, %8, %c0_11, %c0_12] : memref<1x8x8x4xbf16, #tpu.memory_space<vmem>>, vector<1x8x8x4xbf16>
    %10 = vector.shape_cast %9 : vector<1x8x8x4xbf16> to vector<8x8x4xbf16>
    %c1_13 = arith.constant 1 : index
    %c1_14 = arith.constant 1 : index
    %c0_15 = arith.constant 0 : index
    %11 = vector.load %arg6[%c1_13, %c1_14, %c0_15] : memref<10x10x4xbf16, #tpu.memory_space<vmem>>, vector<8x8x4xbf16>
    tpu.vector_store %arg6[%c1_13, %c1_14, %c0_15], %10 {strides = array<i32>} : memref<10x10x4xbf16, #tpu.memory_space<vmem>>, vector<8x8x4xbf16>,
    %c0_i32 = arith.constant 0 : i32
    %12 = arith.cmpi sgt, %arg1, %c0_i32 : i32
    %13 = arith.extui %12 : i1 to i32
    %c0_i32_16 = arith.constant 0 : i32
    %14 = arith.cmpi ne, %13, %c0_i32_16 : i32
    scf.if %14 {
      %c1_i32 = arith.constant 1 : i32
      %44 = arith.subi %1, %c1_i32 : i32
      %c0_34 = arith.constant 0 : index
      %45 = arith.index_cast %44 : i32 to index
      %c0_35 = arith.constant 0 : index
      %c0_36 = arith.constant 0 : index
      %46 = vector.load %arg2[%c0_34, %45, %c0_35, %c0_36] : memref<1x8x8x4xbf16, #tpu.memory_space<vmem>>, vector<1x1x8x4xbf16>
      %47 = vector.shape_cast %46 : vector<1x1x8x4xbf16> to vector<1x8x4xbf16>
      %c0_37 = arith.constant 0 : index
      %c1_38 = arith.constant 1 : index
      %c0_39 = arith.constant 0 : index
      %48 = vector.load %arg6[%c0_37, %c1_38, %c0_39] : memref<10x10x4xbf16, #tpu.memory_space<vmem>>, vector<1x8x4xbf16>
      tpu.vector_store %arg6[%c0_37, %c1_38, %c0_39], %47 {strides = array<i32>} : memref<10x10x4xbf16, #tpu.memory_space<vmem>>, vector<1x8x4xbf16>,
    } else {
    }
    %c0_i32_17 = arith.constant 0 : i32
    %15 = arith.cmpi slt, %arg1, %c0_i32_17 : i32
    %16 = arith.extui %15 : i1 to i32
    %c0_i32_18 = arith.constant 0 : i32
    %17 = arith.cmpi ne, %16, %c0_i32_18 : i32
    scf.if %17 {
      %c8_i32_34 = arith.constant 8 : i32
      %44 = arith.addi %1, %c8_i32_34 : i32
      %c0_35 = arith.constant 0 : index
      %45 = arith.index_cast %44 : i32 to index
      %c0_36 = arith.constant 0 : index
      %c0_37 = arith.constant 0 : index
      %46 = vector.load %arg2[%c0_35, %45, %c0_36, %c0_37] : memref<1x8x8x4xbf16, #tpu.memory_space<vmem>>, vector<1x1x8x4xbf16>
      %47 = vector.shape_cast %46 : vector<1x1x8x4xbf16> to vector<1x8x4xbf16>
      %c9_38 = arith.constant 9 : index
      %c1_39 = arith.constant 1 : index
      %c0_40 = arith.constant 0 : index
      %48 = vector.load %arg6[%c9_38, %c1_39, %c0_40] : memref<10x10x4xbf16, #tpu.memory_space<vmem>>, vector<1x8x4xbf16>
      tpu.vector_store %arg6[%c9_38, %c1_39, %c0_40], %47 {strides = array<i32>} : memref<10x10x4xbf16, #tpu.memory_space<vmem>>, vector<1x8x4xbf16>,
    } else {
    }
    %c0_19 = arith.constant 0 : index
    %c0_20 = arith.constant 0 : index
    %c0_21 = arith.constant 0 : index
    %18 = vector.load %arg6[%c0_19, %c0_20, %c0_21] : memref<10x10x4xbf16, #tpu.memory_space<vmem>>, vector<10x10x4xbf16>
    %19 = vector.extract_strided_slice %18 {offsets = [0, 0, 0], sizes = [10, 8, 4], strides = [1, 1, 1]} : vector<10x10x4xbf16> to vector<10x8x4xbf16>
    %20 = vector.extract_strided_slice %18 {offsets = [0, 1, 0], sizes = [10, 8, 4], strides = [1, 1, 1]} : vector<10x10x4xbf16> to vector<10x8x4xbf16>
    %21 = vector.extract_strided_slice %18 {offsets = [0, 2, 0], sizes = [10, 8, 4], strides = [1, 1, 1]} : vector<10x10x4xbf16> to vector<10x8x4xbf16>
    %22 = tpu.concatenate %19, %20, %21 in 2 : vector<10x8x4xbf16>, vector<10x8x4xbf16>, vector<10x8x4xbf16> -> vector<10x8x12xbf16>
    %23 = vector.extract_strided_slice %22 {offsets = [0, 0, 0], sizes = [8, 8, 12], strides = [1, 1, 1]} : vector<10x8x12xbf16> to vector<8x8x12xbf16>
    %24 = vector.extract_strided_slice %22 {offsets = [1, 0, 0], sizes = [8, 8, 12], strides = [1, 1, 1]} : vector<10x8x12xbf16> to vector<8x8x12xbf16>
    %25 = vector.extract_strided_slice %22 {offsets = [2, 0, 0], sizes = [8, 8, 12], strides = [1, 1, 1]} : vector<10x8x12xbf16> to vector<8x8x12xbf16>
    %26 = tpu.concatenate %23, %24, %25 in 2 : vector<8x8x12xbf16>, vector<8x8x12xbf16>, vector<8x8x12xbf16> -> vector<8x8x36xbf16>
    %27 = vector.shape_cast %26 : vector<8x8x36xbf16> to vector<64x36xbf16>
    %c0_22 = arith.constant 0 : index
    %c0_23 = arith.constant 0 : index
    %28 = vector.load %arg3[%c0_22, %c0_23] : memref<36x8xbf16, #tpu.memory_space<vmem>>, vector<36x8xbf16>
    %cst_24 = arith.constant dense<0.000000e+00> : vector<64x8xf32>
    %29 = tpu.matmul %27, %28, %cst_24 {dimension_numbers = #tpu.dot_dimension_numbers<[1], [0], [0], [1], [0, 0, 1, 1], [], []>} : vector<64x36xbf16>, vector<36x8xbf16>, vector<64x8xf32> -> vector<64x8xf32>
    %30 = vector.shape_cast %29 : vector<64x8xf32> to vector<8x8x8xf32>
    %31 = arith.truncf %30 : vector<8x8x8xf32> to vector<8x8x8xbf16>
    %c0_25 = arith.constant 0 : index
    %c0_26 = arith.constant 0 : index
    %c0_27 = arith.constant 0 : index
    %c0_28 = arith.constant 0 : index
    %32 = vector.load %arg4[%c0_25, %c0_26, %c0_27, %c0_28] : memref<1x8x8x8xbf16, #tpu.memory_space<vmem>>, vector<1x8x8x8xbf16>
    %33 = vector.shape_cast %32 : vector<1x8x8x8xbf16> to vector<8x8x8xbf16>
    %34 = vector.shape_cast %31 : vector<8x8x8xbf16> to vector<1x8x8x8xbf16>
    tpu.vector_store %arg4[%c0_25, %c0_26, %c0_27, %c0_28], %34 {strides = array<i32>} : memref<1x8x8x8xbf16, #tpu.memory_space<vmem>>, vector<1x8x8x8xbf16>,
    %cst_29 = arith.constant dense<0.000000e+00> : vector<8xf32>
    %35 = vector.multi_reduction <add>, %29, %cst_29 [0] : vector<64x8xf32> to vector<8xf32>
    %36 = vector.shape_cast %35 : vector<8xf32> to vector<1x8xf32>
    %37 = arith.mulf %29, %29 : vector<64x8xf32>
    %cst_30 = arith.constant dense<0.000000e+00> : vector<8xf32>
    %38 = vector.multi_reduction <add>, %37, %cst_30 [0] : vector<64x8xf32> to vector<8xf32>
    %39 = vector.shape_cast %38 : vector<8xf32> to vector<1x8xf32>
    %40 = tpu.concatenate %36, %39 in 0 : vector<1x8xf32>, vector<1x8xf32> -> vector<2x8xf32>
    %c0_31 = arith.constant 0 : index
    %c0_32 = arith.constant 0 : index
    %c0_33 = arith.constant 0 : index
    %41 = vector.load %arg5[%c0_31, %c0_32, %c0_33] : memref<1x2x8xf32, #tpu.memory_space<vmem>>, vector<1x2x8xf32>
    %42 = vector.shape_cast %41 : vector<1x2x8xf32> to vector<2x8xf32>
    %43 = vector.shape_cast %40 : vector<2x8xf32> to vector<1x2x8xf32>
    tpu.vector_store %arg5[%c0_31, %c0_32, %c0_33], %43 {strides = array<i32>} : memref<1x2x8xf32, #tpu.memory_space<vmem>>, vector<1x2x8xf32>,
    return
  }
  func.func @transform_0(%arg0: i32, %arg1: i32) -> (i32, i32, i32, i32) {
    %c0_i32 = arith.constant 0 : i32
    %c0_i32_0 = arith.constant 0 : i32
    %c0_i32_1 = arith.constant 0 : i32
    %c0_i32_2 = arith.constant 0 : i32
    return %arg0, %c0_i32, %c0_i32_0, %c0_i32_1 : i32, i32, i32, i32
  }
  func.func @transform_1(%arg0: i32, %arg1: i32) -> (i32, i32) {
    %c0_i32 = arith.constant 0 : i32
    %c0_i32_0 = arith.constant 0 : i32
    %c0_i32_1 = arith.constant 0 : i32
    return %c0_i32, %c0_i32_0 : i32, i32
  }
  func.func @transform_2(%arg0: i32, %arg1: i32) -> (i32, i32, i32, i32) {
    %c0_i32 = arith.constant 0 : i32
    %c0_i32_0 = arith.constant 0 : i32
    %c0_i32_1 = arith.constant 0 : i32
    return %arg0, %arg1, %c0_i32, %c0_i32_0 : i32, i32, i32, i32
  }
  func.func @transform_3(%arg0: i32, %arg1: i32) -> (i32, i32, i32) {
    %c1_i32 = arith.constant 1 : i32
    %0 = arith.muli %arg0, %c1_i32 : i32
    %1 = arith.addi %0, %arg1 : i32
    %c0_i32 = arith.constant 0 : i32
    %c0_i32_0 = arith.constant 0 : i32
    %c0_i32_1 = arith.constant 0 : i32
    return %1, %c0_i32, %c0_i32_0 : i32, i32, i32
  }
}

module attributes {stable_mosaic.version = 11 : i64} {
  func.func @_conv2_kernel(%arg0: i32, %arg1: i32, %arg2: memref<1x8x8x8xbf16, #tpu.memory_space<vmem>>, %arg3: memref<1x8xf32, #tpu.memory_space<vmem>>, %arg4: memref<1x8xf32, #tpu.memory_space<vmem>>, %arg5: memref<72x8xbf16, #tpu.memory_space<vmem>>, %arg6: memref<1x8x8x8xbf16, #tpu.memory_space<vmem>>, %arg7: memref<1x2x8xf32, #tpu.memory_space<vmem>>, %arg8: memref<10x10x8xbf16, #tpu.memory_space<vmem>>) attributes {dimension_semantics = [#tpu.dimension_semantics<parallel>, #tpu.dimension_semantics<parallel>], iteration_bounds = array<i64: 2, 1>, scalar_prefetch = 0 : i64, scratch_operands = 1 : i64, tpu.core_type = #tpu.core_type<tc>, window_params = [{transform_indices = @transform_0, window_bounds = array<i64: 1, 8, 8, 8>}, {pipeline_mode = #tpu.pipeline_mode<synchronous>, transform_indices = @transform_1, window_bounds = array<i64: 1, 8>}, {pipeline_mode = #tpu.pipeline_mode<synchronous>, transform_indices = @transform_2, window_bounds = array<i64: 1, 8>}, {pipeline_mode = #tpu.pipeline_mode<synchronous>, transform_indices = @transform_3, window_bounds = array<i64: 72, 8>}, {transform_indices = @transform_4, window_bounds = array<i64: 1, 8, 8, 8>}, {transform_indices = @transform_5, window_bounds = array<i64: 1, 2, 8>}]} {
    %c8_i32 = arith.constant 8 : i32
    %0 = arith.muli %arg1, %c8_i32 : i32
    %1 = tpu.assume_multiple %0, 8 : i32
    %c0 = arith.constant 0 : index
    %c0_0 = arith.constant 0 : index
    %2 = vector.load %arg3[%c0, %c0_0] : memref<1x8xf32, #tpu.memory_space<vmem>>, vector<1x8xf32>
    %c0_1 = arith.constant 0 : index
    %c0_2 = arith.constant 0 : index
    %3 = vector.load %arg4[%c0_1, %c0_2] : memref<1x8xf32, #tpu.memory_space<vmem>>, vector<1x8xf32>
    %cst = arith.constant 0.000000e+00 : bf16
    %4 = vector.broadcast %cst : bf16 to vector<10x1x8xbf16>
    %c0_3 = arith.constant 0 : index
    %c0_4 = arith.constant 0 : index
    %c0_5 = arith.constant 0 : index
    %5 = vector.load %arg8[%c0_3, %c0_4, %c0_5] : memref<10x10x8xbf16, #tpu.memory_space<vmem>>, vector<10x1x8xbf16>
    tpu.vector_store %arg8[%c0_3, %c0_4, %c0_5], %4 {strides = array<i32>} : memref<10x10x8xbf16, #tpu.memory_space<vmem>>, vector<10x1x8xbf16>,
    %c0_6 = arith.constant 0 : index
    %c9 = arith.constant 9 : index
    %c0_7 = arith.constant 0 : index
    %6 = vector.load %arg8[%c0_6, %c9, %c0_7] : memref<10x10x8xbf16, #tpu.memory_space<vmem>>, vector<10x1x8xbf16>
    tpu.vector_store %arg8[%c0_6, %c9, %c0_7], %4 {strides = array<i32>} : memref<10x10x8xbf16, #tpu.memory_space<vmem>>, vector<10x1x8xbf16>,
    %cst_8 = arith.constant 0.000000e+00 : bf16
    %7 = vector.broadcast %cst_8 : bf16 to vector<1x8x8xbf16>
    %c0_9 = arith.constant 0 : index
    %c1 = arith.constant 1 : index
    %c0_10 = arith.constant 0 : index
    %8 = vector.load %arg8[%c0_9, %c1, %c0_10] : memref<10x10x8xbf16, #tpu.memory_space<vmem>>, vector<1x8x8xbf16>
    tpu.vector_store %arg8[%c0_9, %c1, %c0_10], %7 {strides = array<i32>} : memref<10x10x8xbf16, #tpu.memory_space<vmem>>, vector<1x8x8xbf16>,
    %c9_11 = arith.constant 9 : index
    %c1_12 = arith.constant 1 : index
    %c0_13 = arith.constant 0 : index
    %9 = vector.load %arg8[%c9_11, %c1_12, %c0_13] : memref<10x10x8xbf16, #tpu.memory_space<vmem>>, vector<1x8x8xbf16>
    tpu.vector_store %arg8[%c9_11, %c1_12, %c0_13], %7 {strides = array<i32>} : memref<10x10x8xbf16, #tpu.memory_space<vmem>>, vector<1x8x8xbf16>,
    %c0_14 = arith.constant 0 : index
    %10 = arith.index_cast %1 : i32 to index
    %c0_15 = arith.constant 0 : index
    %c0_16 = arith.constant 0 : index
    %11 = vector.load %arg2[%c0_14, %10, %c0_15, %c0_16] : memref<1x8x8x8xbf16, #tpu.memory_space<vmem>>, vector<1x8x8x8xbf16>
    %12 = vector.shape_cast %11 : vector<1x8x8x8xbf16> to vector<8x8x8xbf16>
    %13 = arith.extf %12 : vector<8x8x8xbf16> to vector<8x8x8xf32>
    %14 = vector.shape_cast %2 : vector<1x8xf32> to vector<1x1x8xf32>
    %15 = vector.broadcast %14 : vector<1x1x8xf32> to vector<8x8x8xf32>
    %16 = arith.mulf %13, %15 : vector<8x8x8xf32>
    %17 = vector.shape_cast %3 : vector<1x8xf32> to vector<1x1x8xf32>
    %18 = vector.broadcast %17 : vector<1x1x8xf32> to vector<8x8x8xf32>
    %19 = arith.addf %16, %18 : vector<8x8x8xf32>
    %cst_17 = arith.constant 0.000000e+00 : f32
    %20 = vector.broadcast %cst_17 : f32 to vector<8x8x8xf32>
    %21 = arith.maximumf %19, %20 : vector<8x8x8xf32>
    %22 = arith.truncf %21 : vector<8x8x8xf32> to vector<8x8x8xbf16>
    %c1_18 = arith.constant 1 : index
    %c1_19 = arith.constant 1 : index
    %c0_20 = arith.constant 0 : index
    %23 = vector.load %arg8[%c1_18, %c1_19, %c0_20] : memref<10x10x8xbf16, #tpu.memory_space<vmem>>, vector<8x8x8xbf16>
    tpu.vector_store %arg8[%c1_18, %c1_19, %c0_20], %22 {strides = array<i32>} : memref<10x10x8xbf16, #tpu.memory_space<vmem>>, vector<8x8x8xbf16>,
    %c0_i32 = arith.constant 0 : i32
    %24 = arith.cmpi sgt, %arg1, %c0_i32 : i32
    %25 = arith.extui %24 : i1 to i32
    %c0_i32_21 = arith.constant 0 : i32
    %26 = arith.cmpi ne, %25, %c0_i32_21 : i32
    scf.if %26 {
      %c1_i32 = arith.constant 1 : i32
      %56 = arith.subi %1, %c1_i32 : i32
      %c0_39 = arith.constant 0 : index
      %57 = arith.index_cast %56 : i32 to index
      %c0_40 = arith.constant 0 : index
      %c0_41 = arith.constant 0 : index
      %58 = vector.load %arg2[%c0_39, %57, %c0_40, %c0_41] : memref<1x8x8x8xbf16, #tpu.memory_space<vmem>>, vector<1x1x8x8xbf16>
      %59 = vector.shape_cast %58 : vector<1x1x8x8xbf16> to vector<1x8x8xbf16>
      %60 = arith.extf %59 : vector<1x8x8xbf16> to vector<1x8x8xf32>
      %61 = vector.shape_cast %2 : vector<1x8xf32> to vector<1x1x8xf32>
      %62 = vector.broadcast %61 : vector<1x1x8xf32> to vector<1x8x8xf32>
      %63 = arith.mulf %60, %62 : vector<1x8x8xf32>
      %64 = vector.shape_cast %3 : vector<1x8xf32> to vector<1x1x8xf32>
      %65 = vector.broadcast %64 : vector<1x1x8xf32> to vector<1x8x8xf32>
      %66 = arith.addf %63, %65 : vector<1x8x8xf32>
      %cst_42 = arith.constant 0.000000e+00 : f32
      %67 = vector.broadcast %cst_42 : f32 to vector<1x8x8xf32>
      %68 = arith.maximumf %66, %67 : vector<1x8x8xf32>
      %69 = arith.truncf %68 : vector<1x8x8xf32> to vector<1x8x8xbf16>
      %c0_43 = arith.constant 0 : index
      %c1_44 = arith.constant 1 : index
      %c0_45 = arith.constant 0 : index
      %70 = vector.load %arg8[%c0_43, %c1_44, %c0_45] : memref<10x10x8xbf16, #tpu.memory_space<vmem>>, vector<1x8x8xbf16>
      tpu.vector_store %arg8[%c0_43, %c1_44, %c0_45], %69 {strides = array<i32>} : memref<10x10x8xbf16, #tpu.memory_space<vmem>>, vector<1x8x8xbf16>,
    } else {
    }
    %c0_i32_22 = arith.constant 0 : i32
    %27 = arith.cmpi slt, %arg1, %c0_i32_22 : i32
    %28 = arith.extui %27 : i1 to i32
    %c0_i32_23 = arith.constant 0 : i32
    %29 = arith.cmpi ne, %28, %c0_i32_23 : i32
    scf.if %29 {
      %c8_i32_39 = arith.constant 8 : i32
      %56 = arith.addi %1, %c8_i32_39 : i32
      %c0_40 = arith.constant 0 : index
      %57 = arith.index_cast %56 : i32 to index
      %c0_41 = arith.constant 0 : index
      %c0_42 = arith.constant 0 : index
      %58 = vector.load %arg2[%c0_40, %57, %c0_41, %c0_42] : memref<1x8x8x8xbf16, #tpu.memory_space<vmem>>, vector<1x1x8x8xbf16>
      %59 = vector.shape_cast %58 : vector<1x1x8x8xbf16> to vector<1x8x8xbf16>
      %60 = arith.extf %59 : vector<1x8x8xbf16> to vector<1x8x8xf32>
      %61 = vector.shape_cast %2 : vector<1x8xf32> to vector<1x1x8xf32>
      %62 = vector.broadcast %61 : vector<1x1x8xf32> to vector<1x8x8xf32>
      %63 = arith.mulf %60, %62 : vector<1x8x8xf32>
      %64 = vector.shape_cast %3 : vector<1x8xf32> to vector<1x1x8xf32>
      %65 = vector.broadcast %64 : vector<1x1x8xf32> to vector<1x8x8xf32>
      %66 = arith.addf %63, %65 : vector<1x8x8xf32>
      %cst_43 = arith.constant 0.000000e+00 : f32
      %67 = vector.broadcast %cst_43 : f32 to vector<1x8x8xf32>
      %68 = arith.maximumf %66, %67 : vector<1x8x8xf32>
      %69 = arith.truncf %68 : vector<1x8x8xf32> to vector<1x8x8xbf16>
      %c9_44 = arith.constant 9 : index
      %c1_45 = arith.constant 1 : index
      %c0_46 = arith.constant 0 : index
      %70 = vector.load %arg8[%c9_44, %c1_45, %c0_46] : memref<10x10x8xbf16, #tpu.memory_space<vmem>>, vector<1x8x8xbf16>
      tpu.vector_store %arg8[%c9_44, %c1_45, %c0_46], %69 {strides = array<i32>} : memref<10x10x8xbf16, #tpu.memory_space<vmem>>, vector<1x8x8xbf16>,
    } else {
    }
    %c0_24 = arith.constant 0 : index
    %c0_25 = arith.constant 0 : index
    %c0_26 = arith.constant 0 : index
    %30 = vector.load %arg8[%c0_24, %c0_25, %c0_26] : memref<10x10x8xbf16, #tpu.memory_space<vmem>>, vector<10x10x8xbf16>
    %31 = vector.extract_strided_slice %30 {offsets = [0, 0, 0], sizes = [10, 8, 8], strides = [1, 1, 1]} : vector<10x10x8xbf16> to vector<10x8x8xbf16>
    %32 = vector.extract_strided_slice %30 {offsets = [0, 1, 0], sizes = [10, 8, 8], strides = [1, 1, 1]} : vector<10x10x8xbf16> to vector<10x8x8xbf16>
    %33 = vector.extract_strided_slice %30 {offsets = [0, 2, 0], sizes = [10, 8, 8], strides = [1, 1, 1]} : vector<10x10x8xbf16> to vector<10x8x8xbf16>
    %34 = tpu.concatenate %31, %32, %33 in 2 : vector<10x8x8xbf16>, vector<10x8x8xbf16>, vector<10x8x8xbf16> -> vector<10x8x24xbf16>
    %35 = vector.extract_strided_slice %34 {offsets = [0, 0, 0], sizes = [8, 8, 24], strides = [1, 1, 1]} : vector<10x8x24xbf16> to vector<8x8x24xbf16>
    %36 = vector.extract_strided_slice %34 {offsets = [1, 0, 0], sizes = [8, 8, 24], strides = [1, 1, 1]} : vector<10x8x24xbf16> to vector<8x8x24xbf16>
    %37 = vector.extract_strided_slice %34 {offsets = [2, 0, 0], sizes = [8, 8, 24], strides = [1, 1, 1]} : vector<10x8x24xbf16> to vector<8x8x24xbf16>
    %38 = tpu.concatenate %35, %36, %37 in 2 : vector<8x8x24xbf16>, vector<8x8x24xbf16>, vector<8x8x24xbf16> -> vector<8x8x72xbf16>
    %39 = vector.shape_cast %38 : vector<8x8x72xbf16> to vector<64x72xbf16>
    %c0_27 = arith.constant 0 : index
    %c0_28 = arith.constant 0 : index
    %40 = vector.load %arg5[%c0_27, %c0_28] : memref<72x8xbf16, #tpu.memory_space<vmem>>, vector<72x8xbf16>
    %cst_29 = arith.constant dense<0.000000e+00> : vector<64x8xf32>
    %41 = tpu.matmul %39, %40, %cst_29 {dimension_numbers = #tpu.dot_dimension_numbers<[1], [0], [0], [1], [0, 0, 1, 1], [], []>} : vector<64x72xbf16>, vector<72x8xbf16>, vector<64x8xf32> -> vector<64x8xf32>
    %42 = vector.shape_cast %41 : vector<64x8xf32> to vector<8x8x8xf32>
    %43 = arith.truncf %42 : vector<8x8x8xf32> to vector<8x8x8xbf16>
    %c0_30 = arith.constant 0 : index
    %c0_31 = arith.constant 0 : index
    %c0_32 = arith.constant 0 : index
    %c0_33 = arith.constant 0 : index
    %44 = vector.load %arg6[%c0_30, %c0_31, %c0_32, %c0_33] : memref<1x8x8x8xbf16, #tpu.memory_space<vmem>>, vector<1x8x8x8xbf16>
    %45 = vector.shape_cast %44 : vector<1x8x8x8xbf16> to vector<8x8x8xbf16>
    %46 = vector.shape_cast %43 : vector<8x8x8xbf16> to vector<1x8x8x8xbf16>
    tpu.vector_store %arg6[%c0_30, %c0_31, %c0_32, %c0_33], %46 {strides = array<i32>} : memref<1x8x8x8xbf16, #tpu.memory_space<vmem>>, vector<1x8x8x8xbf16>,
    %cst_34 = arith.constant dense<0.000000e+00> : vector<8xf32>
    %47 = vector.multi_reduction <add>, %41, %cst_34 [0] : vector<64x8xf32> to vector<8xf32>
    %48 = vector.shape_cast %47 : vector<8xf32> to vector<1x8xf32>
    %49 = arith.mulf %41, %41 : vector<64x8xf32>
    %cst_35 = arith.constant dense<0.000000e+00> : vector<8xf32>
    %50 = vector.multi_reduction <add>, %49, %cst_35 [0] : vector<64x8xf32> to vector<8xf32>
    %51 = vector.shape_cast %50 : vector<8xf32> to vector<1x8xf32>
    %52 = tpu.concatenate %48, %51 in 0 : vector<1x8xf32>, vector<1x8xf32> -> vector<2x8xf32>
    %c0_36 = arith.constant 0 : index
    %c0_37 = arith.constant 0 : index
    %c0_38 = arith.constant 0 : index
    %53 = vector.load %arg7[%c0_36, %c0_37, %c0_38] : memref<1x2x8xf32, #tpu.memory_space<vmem>>, vector<1x2x8xf32>
    %54 = vector.shape_cast %53 : vector<1x2x8xf32> to vector<2x8xf32>
    %55 = vector.shape_cast %52 : vector<2x8xf32> to vector<1x2x8xf32>
    tpu.vector_store %arg7[%c0_36, %c0_37, %c0_38], %55 {strides = array<i32>} : memref<1x2x8xf32, #tpu.memory_space<vmem>>, vector<1x2x8xf32>,
    return
  }
  func.func @transform_0(%arg0: i32, %arg1: i32) -> (i32, i32, i32, i32) {
    %c0_i32 = arith.constant 0 : i32
    %c0_i32_0 = arith.constant 0 : i32
    %c0_i32_1 = arith.constant 0 : i32
    %c0_i32_2 = arith.constant 0 : i32
    return %arg0, %c0_i32, %c0_i32_0, %c0_i32_1 : i32, i32, i32, i32
  }
  func.func @transform_1(%arg0: i32, %arg1: i32) -> (i32, i32) {
    %c0_i32 = arith.constant 0 : i32
    %c0_i32_0 = arith.constant 0 : i32
    %c0_i32_1 = arith.constant 0 : i32
    return %c0_i32, %c0_i32_0 : i32, i32
  }
  func.func @transform_2(%arg0: i32, %arg1: i32) -> (i32, i32) {
    %c0_i32 = arith.constant 0 : i32
    %c0_i32_0 = arith.constant 0 : i32
    %c0_i32_1 = arith.constant 0 : i32
    return %c0_i32, %c0_i32_0 : i32, i32
  }
  func.func @transform_3(%arg0: i32, %arg1: i32) -> (i32, i32) {
    %c0_i32 = arith.constant 0 : i32
    %c0_i32_0 = arith.constant 0 : i32
    %c0_i32_1 = arith.constant 0 : i32
    return %c0_i32, %c0_i32_0 : i32, i32
  }
  func.func @transform_4(%arg0: i32, %arg1: i32) -> (i32, i32, i32, i32) {
    %c0_i32 = arith.constant 0 : i32
    %c0_i32_0 = arith.constant 0 : i32
    %c0_i32_1 = arith.constant 0 : i32
    return %arg0, %arg1, %c0_i32, %c0_i32_0 : i32, i32, i32, i32
  }
  func.func @transform_5(%arg0: i32, %arg1: i32) -> (i32, i32, i32) {
    %c1_i32 = arith.constant 1 : i32
    %0 = arith.muli %arg0, %c1_i32 : i32
    %1 = arith.addi %0, %arg1 : i32
    %c0_i32 = arith.constant 0 : i32
    %c0_i32_0 = arith.constant 0 : i32
    %c0_i32_1 = arith.constant 0 : i32
    return %1, %c0_i32, %c0_i32_0 : i32, i32, i32
  }
}

</mosaic_0001>

<llo_original>
// kernel: down_forward.2
$region0: #{down_forward.2}
  #allocation0 [shape = 'u32[]', space=smem, size = 0x4, offset = 0x4, fixed_abs, tag = 'smem constant byte address 0x4 - core index']
  #allocation1 [shape = 'u32[144,128]{1,0:T(1,128)}', space=vmem, size = 0x12000, scoped, tag = 'internal scratch']
  #allocation2 [shape = 'bf16[10,10,4]{2,1,0:T(8,128)(2,1)}', space=vmem, size = 0xa000, scoped, tag = 'scratch operand']
  %s0 = inlined_call_operand.vmem [shape: bf16[2,8,8,4], index: 0, kind: input, shape index: {}]
  %s1 = inlined_call_operand.vmem [shape: bf16[36,8], index: 1, kind: input, shape index: {}]
  %s2 = inlined_call_operand.vmem [shape: bf16[2,8,8,8], index: 2, kind: output, shape index: {0}]
  %s3 = inlined_call_operand.vmem [shape: f32[2,2,8], index: 3, kind: output, shape index: {1}]
  %4 = xla_tuple %s2, %s3
  %s5 = sld [smem:[#allocation0]]
  $region57: #{down_forward.2} parent=0
    _
  %s7 = ssub.s32 1, %s5
  %s8 = scalar_select 0, %s7, %s5
  loop: start=0, step=1, limit=4
  $region2: #{down_forward.2} parent=0 // loop_pre_header
    _
  $region3: #{down_forward.2} parent=0 // loop_header
    %s10 = sphi 0, %s14
    %p11 = scmp.ge.s32.totalorder %s10, 4
    %s17 = sphi 0, %s29
    %s18 = sphi 0, %s25
    %s19 = sphi 0, %s17
    %s20 = sphi 0, %s18
    %s21 = sphi 0, %s19
    %s22 = sphi 0, %s20
    %s32 = sphi 0, %s34
    %s35 = sphi 0, %s32
    %s36 = sphi 0, %s35
    %s52 = sphi 0, %s36
    %s56 = sphi 0, %s56
    %s58 = sphi 0, %s56
    %s59 = sphi 0, %s58
    %s73 = sphi 0, %s59
    %s81 = sphi 0, %s83
    %s84 = sphi 0, %s81
    %s85 = sphi 0, %s84
    %s101 = sphi 0, %s85
    %s109 = sphi 0, %s111
    %s112 = sphi 0, %s109
    %s113 = sphi 0, %s112
    %s129 = sphi 0, %s113
  $region4: #{down_forward.2} parent=0 // loop_header_branch
    %13 = sbr.rel (%p11) target = $region8
  $region5: #{down_forward.2} parent=0 // loop_body
    %s15 = ssub.s32 %s10, 1
    %s16 = ssub.s32 %s10, 2
    %s23 = sadd.s32 1, %s18
    %p24 = scmp.ge.s32.totalorder %s23, 1
    %s25 = scalar_select %p24, 0, %s23
    %s26 = sadd.s32 1, %s17
    %s27 = scalar_select %p24, %s26, %s17
    %p28 = scmp.ge.s32.totalorder %s27, 2
    %s29 = scalar_select %p28, 0, %s27
    %s30 = ssub.s32 %s17, %s29
    %p31 = scmp.eq.s32.totalorder %s30, 0
    %s33 = sadd.s32 %s32, 1
    %s34 = scalar_select %p31, %s32, %s33
    %p37 = pneg %p31
    %p38 = scmp.eq.s32.totalorder %s10, 1
    %p39 = por %p37, %p38
    %p40 = scmp.ne.s32.totalorder %s32, %s35
    %p41 = scmp.eq.s32.totalorder %s10, 0
    %p42 = por %p40, %p41
    %p43 = scmp.ne.s32.totalorder %s32, %s35
    %p44 = scmp.eq.s32.totalorder %s15, 1
    %p45 = por %p43, %p44
    %p46 = scmp.ne.s32.totalorder %s35, %s36
    %p47 = scmp.eq.s32.totalorder %s15, 0
    %p48 = por %p46, %p47
    %p49 = scmp.ne.s32.totalorder %s35, %s36
    %p50 = scmp.eq.s32.totalorder %s16, 1
    %p51 = por %p49, %p50
    %p53 = scmp.ne.s32.totalorder %s36, %s52
    %p54 = scmp.eq.s32.totalorder %s16, 0
    %p55 = por %p53, %p54
    %s57 = sadd.s32 %s56, 1
    %p60 = scmp.eq.s32.totalorder %s10, 1
    %p61 = scmp.ne.s32.totalorder %s56, %s58
    %p62 = scmp.eq.s32.totalorder %s10, 0
    %p63 = por %p61, %p62
    %p64 = scmp.ne.s32.totalorder %s56, %s58
    %p65 = scmp.eq.s32.totalorder %s15, 1
    %p66 = por %p64, %p65
    %p67 = scmp.ne.s32.totalorder %s58, %s59
    %p68 = scmp.eq.s32.totalorder %s15, 0
    %p69 = por %p67, %p68
    %p70 = scmp.ne.s32.totalorder %s58, %s59
    %p71 = scmp.eq.s32.totalorder %s16, 1
    %p72 = por %p70, %p71
    %p74 = scmp.ne.s32.totalorder %s59, %s73
    %p75 = scmp.eq.s32.totalorder %s16, 0
    %p76 = por %p74, %p75
    %s77 = ssub.s32 %s17, %s29
    %s78 = ssub.s32 %s18, %s25
    %s79 = sor.u32 %s77, %s78
    %p80 = scmp.eq.s32.totalorder %s79, 0
    %s82 = sadd.s32 %s81, 1
    %s83 = scalar_select %p80, %s81, %s82
    %p86 = pneg %p80
    %p87 = scmp.eq.s32.totalorder %s10, 1
    %p88 = por %p86, %p87
    %p89 = scmp.ne.s32.totalorder %s81, %s84
    %p90 = scmp.eq.s32.totalorder %s10, 0
    %p91 = por %p89, %p90
    %p92 = scmp.ne.s32.totalorder %s81, %s84
    %p93 = scmp.eq.s32.totalorder %s15, 1
    %p94 = por %p92, %p93
    %p95 = scmp.ne.s32.totalorder %s84, %s85
    %p96 = scmp.eq.s32.totalorder %s15, 0
    %p97 = por %p95, %p96
    %p98 = scmp.ne.s32.totalorder %s84, %s85
    %p99 = scmp.eq.s32.totalorder %s16, 1
    %p100 = por %p98, %p99
    %p102 = scmp.ne.s32.totalorder %s85, %s101
    %p103 = scmp.eq.s32.totalorder %s16, 0
    %p104 = por %p102, %p103
    %s105 = sadd.s32 %s17, %s18
    %s106 = sadd.s32 %s29, %s25
    %s107 = ssub.s32 %s105, %s106
    %p108 = scmp.eq.s32.totalorder %s107, 0
    %s110 = sadd.s32 %s109, 1
    %s111 = scalar_select %p108, %s109, %s110
    %p114 = pneg %p108
    %p115 = scmp.eq.s32.totalorder %s10, 1
    %p116 = por %p114, %p115
    %p117 = scmp.ne.s32.totalorder %s109, %s112
    %p118 = scmp.eq.s32.totalorder %s10, 0
    %p119 = por %p117, %p118
    %p120 = scmp.ne.s32.totalorder %s109, %s112
    %p121 = scmp.eq.s32.totalorder %s15, 1
    %p122 = por %p120, %p121
    %p123 = scmp.ne.s32.totalorder %s112, %s113
    %p124 = scmp.eq.s32.totalorder %s15, 0
    %p125 = por %p123, %p124
    %p126 = scmp.ne.s32.totalorder %s112, %s113
    %p127 = scmp.eq.s32.totalorder %s16, 1
    %p128 = por %p126, %p127
    %p130 = scmp.ne.s32.totalorder %s113, %s129
    %p131 = scmp.eq.s32.totalorder %s16, 0
    %p132 = por %p130, %p131
    %p133 = scmp.le.s32.totalorder 1, %s10
    %p134 = scmp.lt.s32.totalorder %s10, 3
    %p135 = pnand %p133, %p134
    %p136 = pneg %p135
    // Predicated region
    $region9: #{down_forward.2} parent=5 // pred_check
      _
    $region10: #{down_forward.2} parent=5 // pred_check_branch
      %138 = sbr.rel (%p135) target = $region12
    $region11: #{down_forward.2} parent=5 // pred_region
      %s139 = ssub.s32 %s10, 1
      // Predicated region
      $region13: #{down_forward.2} parent=11 // pred_check
        %p140 = pneg %p69
      $region14: #{down_forward.2} parent=11 // pred_check_branch
        %142 = sbr.rel (%p140) target = $region16
      $region15: #{down_forward.2} parent=11 // pred_region
        _
      $region16: #{down_forward.2} parent=11 // pred_fallthru
        _
    $region12: #{down_forward.2} parent=5 // pred_fallthru
      _
    %p143 = scmp.lt.s32.totalorder %s10, 2
    // Predicated region
    $region17: #{down_forward.2} parent=5 // pred_check
      %p144 = pneg %p143
    $region18: #{down_forward.2} parent=5 // pred_check_branch
      %146 = sbr.rel (%p144) target = $region20
    $region19: #{down_forward.2} parent=5 // pred_region
      // Predicated region
      $region21: #{down_forward.2} parent=19 // pred_check
        %p147 = pneg %p42
      $region22: #{down_forward.2} parent=19 // pred_check_branch
        %149 = sbr.rel (%p147) target = $region24
      $region23: #{down_forward.2} parent=19 // pred_region
        %p150 = scmp.lt.s32.totalorder %s17, 1
        %s151 = scalar_select %p150, %s17, 1
        %s152 = smul.addr %s151, 8
        %s153 = smul.addr %s152, 4
        %s154 = scalar_lea.vmem %s0, %s153
      $region24: #{down_forward.2} parent=19 // pred_fallthru
        _
    $region20: #{down_forward.2} parent=5 // pred_fallthru
      _
    %p155 = scmp.le.s32.totalorder 1, %s10
    %p156 = scmp.lt.s32.totalorder %s10, 3
    %p157 = pnand %p155, %p156
    %p158 = pneg %p157
    // Predicated region
    $region25: #{down_forward.2} parent=5 // pred_check
      _
    $region26: #{down_forward.2} parent=5 // pred_check_branch
      %160 = sbr.rel (%p157) target = $region28
    $region27: #{down_forward.2} parent=5 // pred_region
      %s161 = ssub.s32 %s10, 1
      %p162 = scmp.lt.s32.totalorder %s19, 1
      %s163 = scalar_select %p162, %s19, 1
      %s164 = smul.addr %s163, 8
      %s165 = smul.addr %s164, 4
      %s166 = scalar_lea.vmem %s0, %s165
      %p167 = pneg %p48
      %p168 = pneg %p45
      %p169 = pneg %p69
      %p170 = pneg %p66
      %p171 = pneg %p97
      %p172 = pneg %p94
      %s173 = smul.u32 8, %s20
      %p174 = scmp.lt.s32.totalorder %s19, 1
      %s175 = scalar_select %p174, %s19, 1
      %p176 = scmp.lt.s32.totalorder %s173, 7
      %s177 = scalar_select %p176, %s173, 7
      %s178 = smul.addr %s175, 8
      %s179 = sadd.s32 %s177, %s178
      %s180 = smul.addr %s179, 4
      %s181 = scalar_lea.vmem %s2, %s180
      %p182 = pneg %p125
      %p183 = pneg %p122
      %s184 = sadd.s32 %s19, %s20
      %p185 = scmp.lt.s32.totalorder %s184, 1
      %s186 = scalar_select %p185, %s184, 1
      %s187 = smul.addr %s186, 2
      %s188 = scalar_lea.vmem %s3, %s187
      %p189 = scmp.lt.s32.totalorder %s19, 1
      %s190 = scalar_select %p189, %s19, 1
      %s191 = smul.addr %s190, 8
      %s192 = smul.addr %s191, 4
      %s193 = scalar_lea.vmem %s0, %s192
      %s194 = smul.u32 8, %s20
      %p195 = scmp.lt.s32.totalorder %s19, 1
      %s196 = scalar_select %p195, %s19, 1
      %p197 = scmp.lt.s32.totalorder %s194, 7
      %s198 = scalar_select %p197, %s194, 7
      %s199 = smul.addr %s196, 8
      %s200 = sadd.s32 %s198, %s199
      %s201 = smul.addr %s200, 4
      %s202 = scalar_lea.vmem %s2, %s201
      %s203 = smul.u32 8, %s20
      %s204 = sadd.s32 %s19, %s20
      %p205 = scmp.lt.s32.totalorder %s204, 1
      %s206 = scalar_select %p205, %s204, 1
      %s207 = smul.addr %s206, 2
      %s208 = scalar_lea.vmem %s3, %s207
      %s209 = sadd.s32 %s19, %s20
      %s211 = smul.u32 %s20, 8
      %vm212 = vcmask 24576
      %vm213 = vsmask.f32 256
      %vm214 = vmand %vm212, %vm213
      %v215 = vld [vmem:[#allocation2] sm:$0x1]
      %v216 = vsel %vm214, 0, %v215
      %217 = vst [vmem:[#allocation2] sm:$0x1] %v216
      %v218 = vld [vmem:[#allocation2 + $0x8] sm:$0x1]
      %v219 = vsel %vm214, 0, %v218
      %220 = vst [vmem:[#allocation2 + $0x8] sm:$0x1] %v219
      %v221 = vld [vmem:[#allocation2 + $0x10] sm:$0x1]
      %v222 = vsel %vm214, 0, %v221
      %223 = vst [vmem:[#allocation2 + $0x10] sm:$0x1] %v222
      %v224 = vld [vmem:[#allocation2 + $0x18] sm:$0x1]
      %v225 = vsel %vm214, 0, %v224
      %226 = vst [vmem:[#allocation2 + $0x18] sm:$0x1] %v225
      %v227 = vld [vmem:[#allocation2 + $0x20] sm:$0x1]
      %v228 = vsel %vm214, 0, %v227
      %229 = vst [vmem:[#allocation2 + $0x20] sm:$0x1] %v228
      %v230 = vld [vmem:[#allocation2 + $0x28] sm:$0x1]
      %v231 = vsel %vm214, 0, %v230
      %232 = vst [vmem:[#allocation2 + $0x28] sm:$0x1] %v231
      %v233 = vld [vmem:[#allocation2 + $0x30] sm:$0x1]
      %v234 = vsel %vm214, 0, %v233
      %235 = vst [vmem:[#allocation2 + $0x30] sm:$0x1] %v234
      %v236 = vld [vmem:[#allocation2 + $0x38] sm:$0x1]
      %v237 = vsel %vm214, 0, %v236
      %238 = vst [vmem:[#allocation2 + $0x38] sm:$0x1] %v237
      %v239 = vld [vmem:[#allocation2 + $0x40] sm:$0x1]
      %v240 = vsel %vm214, 0, %v239
      %241 = vst [vmem:[#allocation2 + $0x40] sm:$0x1] %v240
      %v242 = vld [vmem:[#allocation2 + $0x48] sm:$0x1]
      %v243 = vsel %vm214, 0, %v242
      %244 = vst [vmem:[#allocation2 + $0x48] sm:$0x1] %v243
      %vm245 = vsmask.f32 7938
      %vm246 = vmand %vm212, %vm245
      %v247 = vld [vmem:[#allocation2 + $0x4] sm:$0x1]
      %v248 = vsel %vm246, 0, %v247
      %249 = vst [vmem:[#allocation2 + $0x4] sm:$0x1] %v248
      %v250 = vld [vmem:[#allocation2 + $0xc] sm:$0x1]
      %v251 = vsel %vm246, 0, %v250
      %252 = vst [vmem:[#allocation2 + $0xc] sm:$0x1] %v251
      %v253 = vld [vmem:[#allocation2 + $0x14] sm:$0x1]
      %v254 = vsel %vm246, 0, %v253
      %255 = vst [vmem:[#allocation2 + $0x14] sm:$0x1] %v254
      %v256 = vld [vmem:[#allocation2 + $0x1c] sm:$0x1]
      %v257 = vsel %vm246, 0, %v256
      %258 = vst [vmem:[#allocation2 + $0x1c] sm:$0x1] %v257
      %v259 = vld [vmem:[#allocation2 + $0x24] sm:$0x1]
      %v260 = vsel %vm246, 0, %v259
      %261 = vst [vmem:[#allocation2 + $0x24] sm:$0x1] %v260
      %v262 = vld [vmem:[#allocation2 + $0x2c] sm:$0x1]
      %v263 = vsel %vm246, 0, %v262
      %264 = vst [vmem:[#allocation2 + $0x2c] sm:$0x1] %v263
      %v265 = vld [vmem:[#allocation2 + $0x34] sm:$0x1]
      %v266 = vsel %vm246, 0, %v265
      %267 = vst [vmem:[#allocation2 + $0x34] sm:$0x1] %v266
      %v268 = vld [vmem:[#allocation2 + $0x3c] sm:$0x1]
      %v269 = vsel %vm246, 0, %v268
      %270 = vst [vmem:[#allocation2 + $0x3c] sm:$0x1] %v269
      %v271 = vld [vmem:[#allocation2 + $0x44] sm:$0x1]
      %v272 = vsel %vm246, 0, %v271
      %273 = vst [vmem:[#allocation2 + $0x44] sm:$0x1] %v272
      %v274 = vld [vmem:[#allocation2 + $0x4c] sm:$0x1]
      %v275 = vsel %vm246, 0, %v274
      %276 = vst [vmem:[#allocation2 + $0x4c] sm:$0x1] %v275
      %vm277 = vcmask 27648
      %vm278 = vmand %vm277, %vm245
      %v279 = vld [vmem:[#allocation2] sm:$0xf]
      %v280 = vsel %vm278, 0, %v279
      %281 = vst [vmem:[#allocation2] sm:$0xf] %v280
      %v282 = vld [vmem:[#allocation2 + $0x4] sm:$0x1]
      %v283 = vsel %vm214, 0, %v282
      %284 = vst [vmem:[#allocation2 + $0x4] sm:$0x1] %v283
      %s285 = scalar_lea.vmem [#allocation2], 72
      %v286 = vld [vmem:[%s285] sm:$0xf]
      %v287 = vsel %vm278, 0, %v286
      %288 = vst [vmem:[%s285] sm:$0xf] %v287
      %v289 = vld [vmem:[%s285 + $0x4] sm:$0x1]
      %v290 = vsel %vm214, 0, %v289
      %291 = vst [vmem:[%s285 + $0x4] sm:$0x1] %v290
      %s292 = smul.addr %s211, 4
      %s293 = scalar_lea.vmem %s193, %s292
      %v294 = vld [vmem:[%s293] sm:$0xf]
      %v295 = vld [vmem:[%s293 + $0x4] sm:$0xf]
      %v296 = vld [vmem:[%s293 + $0x8] sm:$0xf]
      %v297 = vld [vmem:[%s293 + $0xc] sm:$0xf]
      %v298 = vld [vmem:[%s293 + $0x10] sm:$0xf]
      %v299 = vld [vmem:[%s293 + $0x14] sm:$0xf]
      %v300 = vld [vmem:[%s293 + $0x18] sm:$0xf]
      %v301 = vld [vmem:[%s293 + $0x1c] sm:$0xf]
      %v303 = vshrl.u32 %v294, 16
      %v305 = vrot.slane %v303, 7
      %v306 = vshll.u32 %v294, 16
      %v308 = vor.u32 %v305, %v306
      %v309 = vrot.slane %v305, 4
      %v311 = vshrl.u32 %v295, 16
      %v313 = vrot.slane %v311, 7
      %v314 = vshll.u32 %v295, 16
      %v316 = vor.u32 %v313, %v314
      %v317 = vrot.slane %v313, 4
      %v319 = vshrl.u32 %v296, 16
      %v321 = vrot.slane %v319, 7
      %v322 = vshll.u32 %v296, 16
      %v324 = vor.u32 %v321, %v322
      %v325 = vrot.slane %v321, 4
      %v327 = vshrl.u32 %v297, 16
      %v329 = vrot.slane %v327, 7
      %v330 = vshll.u32 %v297, 16
      %v332 = vor.u32 %v329, %v330
      %v333 = vrot.slane %v329, 4
      %v335 = vshrl.u32 %v298, 16
      %v337 = vrot.slane %v335, 7
      %v338 = vshll.u32 %v298, 16
      %v340 = vor.u32 %v337, %v338
      %v341 = vrot.slane %v337, 4
      %v343 = vshrl.u32 %v299, 16
      %v345 = vrot.slane %v343, 7
      %v346 = vshll.u32 %v299, 16
      %v348 = vor.u32 %v345, %v346
      %v349 = vrot.slane %v345, 4
      %v351 = vshrl.u32 %v300, 16
      %v353 = vrot.slane %v351, 7
      %v354 = vshll.u32 %v300, 16
      %v356 = vor.u32 %v353, %v354
      %v357 = vrot.slane %v353, 4
      %v359 = vshrl.u32 %v301, 16
      %v361 = vrot.slane %v359, 7
      %v362 = vshll.u32 %v301, 16
      %v364 = vor.u32 %v361, %v362
      %v365 = vrot.slane %v361, 4
      %s382 = scalar_lea.vmem [#allocation2], 8
      %v383 = vld [vmem:[%s382] sm:$0xf]
      %v384 = vsel %vm278, %v308, %v383
      %385 = vst [vmem:[%s382] sm:$0xf] %v384
      %v386 = vld [vmem:[%s382 + $0x4] sm:$0x1]
      %v387 = vsel %vm214, %v309, %v386
      %388 = vst [vmem:[%s382 + $0x4] sm:$0x1] %v387
      %v389 = vld [vmem:[%s382 + $0x8] sm:$0xf]
      %v390 = vsel %vm278, %v316, %v389
      %391 = vst [vmem:[%s382 + $0x8] sm:$0xf] %v390
      %v392 = vld [vmem:[%s382 + $0xc] sm:$0x1]
      %v393 = vsel %vm214, %v317, %v392
      %394 = vst [vmem:[%s382 + $0xc] sm:$0x1] %v393
      %v395 = vld [vmem:[%s382 + $0x10] sm:$0xf]
      %v396 = vsel %vm278, %v324, %v395
      %397 = vst [vmem:[%s382 + $0x10] sm:$0xf] %v396
      %v398 = vld [vmem:[%s382 + $0x14] sm:$0x1]
      %v399 = vsel %vm214, %v325, %v398
      %400 = vst [vmem:[%s382 + $0x14] sm:$0x1] %v399
      %v401 = vld [vmem:[%s382 + $0x18] sm:$0xf]
      %v402 = vsel %vm278, %v332, %v401
      %403 = vst [vmem:[%s382 + $0x18] sm:$0xf] %v402
      %v404 = vld [vmem:[%s382 + $0x1c] sm:$0x1]
      %v405 = vsel %vm214, %v333, %v404
      %406 = vst [vmem:[%s382 + $0x1c] sm:$0x1] %v405
      %v407 = vld [vmem:[%s382 + $0x20] sm:$0xf]
      %v408 = vsel %vm278, %v340, %v407
      %409 = vst [vmem:[%s382 + $0x20] sm:$0xf] %v408
      %v410 = vld [vmem:[%s382 + $0x24] sm:$0x1]
      %v411 = vsel %vm214, %v341, %v410
      %412 = vst [vmem:[%s382 + $0x24] sm:$0x1] %v411
      %v413 = vld [vmem:[%s382 + $0x28] sm:$0xf]
      %v414 = vsel %vm278, %v348, %v413
      %415 = vst [vmem:[%s382 + $0x28] sm:$0xf] %v414
      %v416 = vld [vmem:[%s382 + $0x2c] sm:$0x1]
      %v417 = vsel %vm214, %v349, %v416
      %418 = vst [vmem:[%s382 + $0x2c] sm:$0x1] %v417
      %v419 = vld [vmem:[%s382 + $0x30] sm:$0xf]
      %v420 = vsel %vm278, %v356, %v419
      %421 = vst [vmem:[%s382 + $0x30] sm:$0xf] %v420
      %v422 = vld [vmem:[%s382 + $0x34] sm:$0x1]
      %v423 = vsel %vm214, %v357, %v422
      %424 = vst [vmem:[%s382 + $0x34] sm:$0x1] %v423
      %v425 = vld [vmem:[%s382 + $0x38] sm:$0xf]
      %v426 = vsel %vm278, %v364, %v425
      %427 = vst [vmem:[%s382 + $0x38] sm:$0xf] %v426
      %v428 = vld [vmem:[%s382 + $0x3c] sm:$0x1]
      %v429 = vsel %vm214, %v365, %v428
      %430 = vst [vmem:[%s382 + $0x3c] sm:$0x1] %v429
      %p431 = scmp.gt.s32.totalorder %s20, 0
      // Predicated region
      $region29: #{down_forward.2} parent=27 // pred_check
        %p432 = pneg %p431
      $region30: #{down_forward.2} parent=27 // pred_check_branch
        %434 = sbr.rel (%p432) target = $region32
      $region31: #{down_forward.2} parent=27 // pred_region
        %s435 = ssub.s32 %s211, 1
        %s436 = smul.addr %s435, 4
        %s437 = scalar_lea.vmem %s193, %s436
        %v438 = vld [vmem:[%s437] sm:$0xf]
        %v440 = vshrl.u32 %v438, 16
        %v442 = vrot.slane %v440, 7
        %v443 = vshll.u32 %v438, 16
        %v445 = vor.u32 %v442, %v443
        %v446 = vrot.slane %v442, 4
        %v449 = vld [vmem:[#allocation2] sm:$0xf]
        %v450 = vsel %vm278, %v445, %v449
        %451 = vst [vmem:[#allocation2] sm:$0xf] %v450
        %v452 = vld [vmem:[#allocation2 + $0x4] sm:$0x1]
        %v453 = vsel %vm214, %v446, %v452
        %454 = vst [vmem:[#allocation2 + $0x4] sm:$0x1] %v453
      $region32: #{down_forward.2} parent=27 // pred_fallthru
        _
      %p455 = scmp.lt.s32.totalorder %s20, 0
      // Predicated region
      $region33: #{down_forward.2} parent=27 // pred_check
        %p456 = pneg %p455
      $region34: #{down_forward.2} parent=27 // pred_check_branch
        %458 = sbr.rel (%p456) target = $region36
      $region35: #{down_forward.2} parent=27 // pred_region
        %s459 = sadd.s32 %s211, 8
        %s460 = smul.addr %s459, 4
        %s461 = scalar_lea.vmem %s193, %s460
        %v462 = vld [vmem:[%s461] sm:$0xf]
        %v464 = vshrl.u32 %v462, 16
        %v466 = vrot.slane %v464, 7
        %v467 = vshll.u32 %v462, 16
        %v469 = vor.u32 %v466, %v467
        %v470 = vrot.slane %v466, 4
        %v473 = vld [vmem:[%s285] sm:$0xf]
        %v474 = vsel %vm278, %v469, %v473
        %475 = vst [vmem:[%s285] sm:$0xf] %v474
        %v476 = vld [vmem:[%s285 + $0x4] sm:$0x1]
        %v477 = vsel %vm214, %v470, %v476
        %478 = vst [vmem:[%s285 + $0x4] sm:$0x1] %v477
      $region36: #{down_forward.2} parent=27 // pred_fallthru
        _
      %v479 = vld [vmem:[#allocation2] sm:$0xf]
      %v480 = vld [vmem:[#allocation2 + $0x4] sm:$0x1]
      %v481 = vld [vmem:[#allocation2 + $0x8] sm:$0xf]
      %v482 = vld [vmem:[#allocation2 + $0xc] sm:$0x1]
      %v483 = vld [vmem:[#allocation2 + $0x10] sm:$0xf]
      %v484 = vld [vmem:[#allocation2 + $0x14] sm:$0x1]
      %v485 = vld [vmem:[#allocation2 + $0x18] sm:$0xf]
      %v486 = vld [vmem:[#allocation2 + $0x1c] sm:$0x1]
      %v487 = vld [vmem:[#allocation2 + $0x20] sm:$0xf]
      %v488 = vld [vmem:[#allocation2 + $0x24] sm:$0x1]
      %v489 = vld [vmem:[#allocation2 + $0x28] sm:$0xf]
      %v490 = vld [vmem:[#allocation2 + $0x2c] sm:$0x1]
      %v491 = vld [vmem:[#allocation2 + $0x30] sm:$0xf]
      %v492 = vld [vmem:[#allocation2 + $0x34] sm:$0x1]
      %v493 = vld [vmem:[#allocation2 + $0x38] sm:$0xf]
      %v494 = vld [vmem:[#allocation2 + $0x3c] sm:$0x1]
      %v495 = vld [vmem:[#allocation2 + $0x40] sm:$0xf]
      %v496 = vld [vmem:[#allocation2 + $0x44] sm:$0x1]
      %v497 = vld [vmem:[#allocation2 + $0x48] sm:$0xf]
      %v498 = vld [vmem:[#allocation2 + $0x4c] sm:$0x1]
      %v519 = vunpack.c.l.b16 %v479
      %v520 = vunpack.c.l.b16 %v480
      %v521 = vunpack.c.l.b16 %v481
      %v522 = vunpack.c.l.b16 %v482
      %v523 = vunpack.c.l.b16 %v483
      %v524 = vunpack.c.l.b16 %v484
      %v525 = vunpack.c.l.b16 %v485
      %v526 = vunpack.c.l.b16 %v486
      %v527 = vunpack.c.l.b16 %v487
      %v528 = vunpack.c.l.b16 %v488
      %v529 = vunpack.c.l.b16 %v489
      %v530 = vunpack.c.l.b16 %v490
      %v531 = vunpack.c.l.b16 %v491
      %v532 = vunpack.c.l.b16 %v492
      %v533 = vunpack.c.l.b16 %v493
      %v534 = vunpack.c.l.b16 %v494
      %v535 = vunpack.c.l.b16 %v495
      %v536 = vunpack.c.l.b16 %v496
      %v537 = vunpack.c.l.b16 %v497
      %v538 = vunpack.c.l.b16 %v498
      %v539 = vpack.c.b16 %v520, %v519
      %v540 = vpack.c.b16 %v522, %v521
      %v541 = vpack.c.b16 %v524, %v523
      %v542 = vpack.c.b16 %v526, %v525
      %v543 = vpack.c.b16 %v528, %v527
      %v544 = vpack.c.b16 %v530, %v529
      %v545 = vpack.c.b16 %v532, %v531
      %v546 = vpack.c.b16 %v534, %v533
      %v547 = vpack.c.b16 %v536, %v535
      %v548 = vpack.c.b16 %v538, %v537
      %v550 = vshrl.u32 %v539, 16
      %v552 = vshll.u32 %v539, 16
      %v554 = vrot.slane %v552, 1
      %v555 = vor.u32 %v550, %v554
      %v557 = vshrl.u32 %v540, 16
      %v559 = vshll.u32 %v540, 16
      %v561 = vrot.slane %v559, 1
      %v562 = vor.u32 %v557, %v561
      %v564 = vshrl.u32 %v541, 16
      %v566 = vshll.u32 %v541, 16
      %v568 = vrot.slane %v566, 1
      %v569 = vor.u32 %v564, %v568
      %v571 = vshrl.u32 %v542, 16
      %v573 = vshll.u32 %v542, 16
      %v575 = vrot.slane %v573, 1
      %v576 = vor.u32 %v571, %v575
      %v578 = vshrl.u32 %v543, 16
      %v580 = vshll.u32 %v543, 16
      %v582 = vrot.slane %v580, 1
      %v583 = vor.u32 %v578, %v582
      %v585 = vshrl.u32 %v544, 16
      %v587 = vshll.u32 %v544, 16
      %v589 = vrot.slane %v587, 1
      %v590 = vor.u32 %v585, %v589
      %v592 = vshrl.u32 %v545, 16
      %v594 = vshll.u32 %v545, 16
      %v596 = vrot.slane %v594, 1
      %v597 = vor.u32 %v592, %v596
      %v599 = vshrl.u32 %v546, 16
      %v601 = vshll.u32 %v546, 16
      %v603 = vrot.slane %v601, 1
      %v604 = vor.u32 %v599, %v603
      %v606 = vshrl.u32 %v547, 16
      %v608 = vshll.u32 %v547, 16
      %v610 = vrot.slane %v608, 1
      %v611 = vor.u32 %v606, %v610
      %v613 = vshrl.u32 %v548, 16
      %v615 = vshll.u32 %v548, 16
      %v617 = vrot.slane %v615, 1
      %v618 = vor.u32 %v613, %v617
      %619 = vrot.lane.b32.xlu0 %v555, 4
      %v620 = vpop.permute.xlu0 %619
      %621 = vrot.lane.b32.xlu0 %v562, 4
      %v622 = vpop.permute.xlu0 %621
      %623 = vrot.lane.b32.xlu0 %v569, 4
      %v624 = vpop.permute.xlu0 %623
      %625 = vrot.lane.b32.xlu0 %v576, 4
      %v626 = vpop.permute.xlu0 %625
      %627 = vrot.lane.b32.xlu0 %v583, 4
      %v628 = vpop.permute.xlu0 %627
      %629 = vrot.lane.b32.xlu0 %v590, 4
      %v630 = vpop.permute.xlu0 %629
      %631 = vrot.lane.b32.xlu0 %v597, 4
      %v632 = vpop.permute.xlu0 %631
      %633 = vrot.lane.b32.xlu0 %v604, 4
      %v634 = vpop.permute.xlu0 %633
      %635 = vrot.lane.b32.xlu0 %v611, 4
      %v636 = vpop.permute.xlu0 %635
      %637 = vrot.lane.b32.xlu0 %v618, 4
      %v638 = vpop.permute.xlu0 %637
      %v639 = vrot.slane %v539, 1
      %v640 = vrot.slane %v540, 1
      %v641 = vrot.slane %v541, 1
      %v642 = vrot.slane %v542, 1
      %v643 = vrot.slane %v543, 1
      %v644 = vrot.slane %v544, 1
      %v645 = vrot.slane %v545, 1
      %v646 = vrot.slane %v546, 1
      %v647 = vrot.slane %v547, 1
      %v648 = vrot.slane %v548, 1
      %649 = vrot.lane.b32.xlu0 %v639, 8
      %v650 = vpop.permute.xlu0 %649
      %651 = vrot.lane.b32.xlu0 %v640, 8
      %v652 = vpop.permute.xlu0 %651
      %653 = vrot.lane.b32.xlu0 %v641, 8
      %v654 = vpop.permute.xlu0 %653
      %655 = vrot.lane.b32.xlu0 %v642, 8
      %v656 = vpop.permute.xlu0 %655
      %657 = vrot.lane.b32.xlu0 %v643, 8
      %v658 = vpop.permute.xlu0 %657
      %659 = vrot.lane.b32.xlu0 %v644, 8
      %v660 = vpop.permute.xlu0 %659
      %661 = vrot.lane.b32.xlu0 %v645, 8
      %v662 = vpop.permute.xlu0 %661
      %663 = vrot.lane.b32.xlu0 %v646, 8
      %v664 = vpop.permute.xlu0 %663
      %665 = vrot.lane.b32.xlu0 %v647, 8
      %v666 = vpop.permute.xlu0 %665
      %667 = vrot.lane.b32.xlu0 %v648, 8
      %v668 = vpop.permute.xlu0 %667
      %vm669 = vcmask 31744
      %v672 = vsel %vm669, %v479, %v620
      %v675 = vsel %vm669, %v481, %v622
      %v678 = vsel %vm669, %v483, %v624
      %v681 = vsel %vm669, %v485, %v626
      %v684 = vsel %vm669, %v487, %v628
      %v687 = vsel %vm669, %v489, %v630
      %v690 = vsel %vm669, %v491, %v632
      %v693 = vsel %vm669, %v493, %v634
      %v696 = vsel %vm669, %v495, %v636
      %v699 = vsel %vm669, %v497, %v638
      %vm700 = vcmask 64512
      %v702 = vsel %vm700, %v672, %v650
      %v704 = vsel %vm700, %v675, %v652
      %v706 = vsel %vm700, %v678, %v654
      %v708 = vsel %vm700, %v681, %v656
      %v710 = vsel %vm700, %v684, %v658
      %v712 = vsel %vm700, %v687, %v660
      %v714 = vsel %vm700, %v690, %v662
      %v716 = vsel %vm700, %v693, %v664
      %v718 = vsel %vm700, %v696, %v666
      %v720 = vsel %vm700, %v699, %v668
      %729 = vrot.lane.b32.xlu0 %v704, 12
      %v730 = vpop.permute.xlu0 %729
      %731 = vrot.lane.b32.xlu0 %v706, 12
      %v732 = vpop.permute.xlu0 %731
      %733 = vrot.lane.b32.xlu0 %v708, 12
      %v734 = vpop.permute.xlu0 %733
      %735 = vrot.lane.b32.xlu0 %v710, 12
      %v736 = vpop.permute.xlu0 %735
      %737 = vrot.lane.b32.xlu0 %v712, 12
      %v738 = vpop.permute.xlu0 %737
      %739 = vrot.lane.b32.xlu0 %v714, 12
      %v740 = vpop.permute.xlu0 %739
      %741 = vrot.lane.b32.xlu0 %v716, 12
      %v742 = vpop.permute.xlu0 %741
      %743 = vrot.lane.b32.xlu0 %v718, 12
      %v744 = vpop.permute.xlu0 %743
      %746 = vrot.lane.b32.xlu0 %v706, 24
      %v747 = vpop.permute.xlu0 %746
      %748 = vrot.lane.b32.xlu0 %v708, 24
      %v749 = vpop.permute.xlu0 %748
      %750 = vrot.lane.b32.xlu0 %v710, 24
      %v751 = vpop.permute.xlu0 %750
      %752 = vrot.lane.b32.xlu0 %v712, 24
      %v753 = vpop.permute.xlu0 %752
      %754 = vrot.lane.b32.xlu0 %v714, 24
      %v755 = vpop.permute.xlu0 %754
      %756 = vrot.lane.b32.xlu0 %v716, 24
      %v757 = vpop.permute.xlu0 %756
      %758 = vrot.lane.b32.xlu0 %v718, 24
      %v759 = vpop.permute.xlu0 %758
      %760 = vrot.lane.b32.xlu0 %v720, 24
      %v761 = vpop.permute.xlu0 %760
      %vm762 = vcmask 97280
      %v764 = vsel %vm762, %v702, %v730
      %v766 = vsel %vm762, %v704, %v732
      %v768 = vsel %vm762, %v706, %v734
      %v770 = vsel %vm762, %v708, %v736
      %v772 = vsel %vm762, %v710, %v738
      %v774 = vsel %vm762, %v712, %v740
      %v776 = vsel %vm762, %v714, %v742
      %v778 = vsel %vm762, %v716, %v744
      %vm779 = vcmask 195584
      %v781 = vsel %vm779, %v764, %v747
      %v783 = vsel %vm779, %v766, %v749
      %v785 = vsel %vm779, %v768, %v751
      %v787 = vsel %vm779, %v770, %v753
      %v789 = vsel %vm779, %v772, %v755
      %v791 = vsel %vm779, %v774, %v757
      %v793 = vsel %vm779, %v776, %v759
      %v795 = vsel %vm779, %v778, %v761
      %v796 = vld [vmem:[%s1] sm:$0xf]
      %v797 = vld [vmem:[%s1 + $0x4] sm:$0xf]
      %v798 = vld [vmem:[%s1 + $0x8] sm:$0xf]
      %v799 = vld [vmem:[%s1 + $0xc] sm:$0xf]
      %v800 = vld [vmem:[%s1 + $0x10] sm:$0x3]
      %v809 = vunpack.c.l.b16 %v781
      %v810 = vunpack.c.l.b16 %v783
      %v811 = vunpack.c.l.b16 %v785
      %v812 = vunpack.c.l.b16 %v787
      %v813 = vunpack.c.l.b16 %v789
      %v814 = vunpack.c.l.b16 %v791
      %v815 = vunpack.c.l.b16 %v793
      %v816 = vunpack.c.l.b16 %v795
      %v817 = vpack.c.b16 %v810, %v809
      %v818 = vpack.c.b16 %v812, %v811
      %v819 = vpack.c.b16 %v814, %v813
      %v820 = vpack.c.b16 %v816, %v815
      %v826 = vunpack.c.l.b16 %v796
      %v827 = vunpack.c.l.b16 %v797
      %v828 = vunpack.c.l.b16 %v798
      %v829 = vunpack.c.l.b16 %v799
      %v830 = vunpack.c.l.b16 %v800
      %v831 = vpack.c.b16 %v827, %v826
      %v832 = vpack.c.b16 %v829, %v828
      %v833 = vpack.c.b16 %v830, %v830
      %vm836 = vcmask 293888
      %v838 = vsel %vm836, %v817, 0
      %v841 = vsel %vm836, %v818, 0
      %v844 = vsel %vm836, %v819, 0
      %v847 = vsel %vm836, %v820, 0
      %vm849 = vcmask 1041408
      %v851 = vsel %vm849, %v833, 0
      %853 = vmatprep.subr.bf16.mxu0 0
      %854 = vmatpush1.bf16.msra.mxu0 0
      %855 = vmatprep.subr.bf16.mxu0 0
      %856 = vmatpush1.bf16.msra.mxu0 0
      %857 = vmatprep.subr.bf16.mxu0 0
      %858 = vmatpush1.bf16.msra.mxu0 0
      %859 = vmatprep.subr.bf16.mxu0 0
      %860 = vmatpush1.bf16.msra.mxu0 0
      %861 = vmatprep.subr.bf16.mxu0 0
      %862 = vmatpush1.bf16.msra.mxu0 0
      %863 = vmatprep.subr.bf16.mxu0 0
      %864 = vmatpush1.bf16.msra.mxu0 %v851
      %865 = vmatprep.subr.bf16.mxu0 0
      %866 = vmatpush1.bf16.msra.mxu0 %v832
      %867 = vmatprep.subr.bf16.mxu0 0
      %868 = vmatpush1.bf16.msra.mxu0 %v831
      %869 = vmatprep.subr.bf16.mxu0 0
      %870 = vmatpush2.bf16.msra.mxu0 0
      %871 = vmatprep.subr.bf16.mxu0 0
      %872 = vmatpush2.bf16.msra.mxu0 0
      %873 = vmatprep.subr.bf16.mxu0 0
      %874 = vmatpush2.bf16.msra.mxu0 0
      %875 = vmatprep.subr.bf16.mxu0 0
      %876 = vmatpush2.bf16.msra.mxu0 0
      %877 = vmatprep.subr.bf16.mxu0 0
      %878 = vmatpush2.bf16.msra.mxu0 0
      %879 = vmatprep.subr.bf16.mxu0 0
      %880 = vmatpush2.bf16.msra.mxu0 0
      %881 = vmatprep.subr.bf16.mxu0 0
      %882 = vmatpush2.bf16.msra.mxu0 0
      %883 = vmatprep.subr.bf16.mxu0 0
      %884 = vmatpush2.bf16.msra.mxu0 0
      %885 = vmatprep.mubr.bf16.mxu0 0
      %886 = vmatmul.mubr.bf16.gmra.mxu0 %v838
      %v887 = vpop.f32.mrf.mxu0
      %v888 = vadd.f32 0.0, %v887
      %v889 = vpop.f32.mrf.mxu0
      %v890 = vpop.f32.mrf.mxu0
      %v891 = vadd.f32 0.0, %v890
      %v892 = vpop.f32.mrf.mxu0
      %893 = vmatprep.mubr.bf16.mxu0 0
      %894 = vmatmul.mubr.bf16.gmra.mxu0 %v841
      %v895 = vpop.f32.mrf.mxu0
      %v896 = vadd.f32 0.0, %v895
      %v897 = vpop.f32.mrf.mxu0
      %v898 = vpop.f32.mrf.mxu0
      %v899 = vadd.f32 0.0, %v898
      %v900 = vpop.f32.mrf.mxu0
      %901 = vmatprep.mubr.bf16.mxu0 0
      %902 = vmatmul.mubr.bf16.gmra.mxu0 %v844
      %v903 = vpop.f32.mrf.mxu0
      %v904 = vadd.f32 0.0, %v903
      %v905 = vpop.f32.mrf.mxu0
      %v906 = vpop.f32.mrf.mxu0
      %v907 = vadd.f32 0.0, %v906
      %v908 = vpop.f32.mrf.mxu0
      %909 = vmatprep.mubr.bf16.mxu0 0
      %910 = vmatmul.mubr.bf16.gmra.mxu0 %v847
      %v911 = vpop.f32.mrf.mxu0
      %v912 = vadd.f32 0.0, %v911
      %v913 = vpop.f32.mrf.mxu0
      %v914 = vpop.f32.mrf.mxu0
      %v915 = vadd.f32 0.0, %v914
      %v916 = vpop.f32.mrf.mxu0
      %917 = vdwg.mxu0
      %v918 = vpack.c.bf16 %v888, %v888
      %v919 = vpack.c.bf16 %v891, %v891
      %v920 = vpack.c.bf16 %v896, %v896
      %v921 = vpack.c.bf16 %v899, %v899
      %v922 = vpack.c.bf16 %v904, %v904
      %v923 = vpack.c.bf16 %v907, %v907
      %v924 = vpack.c.bf16 %v912, %v912
      %v925 = vpack.c.bf16 %v915, %v915
      %vm926 = vcmask 60416
      %927 = vst.msk [vmem:[%s202] sm:$0xf] %vm926, %v918
      %928 = vst.msk [vmem:[%s202 + $0x4] sm:$0xf] %vm926, %v919
      %929 = vst.msk [vmem:[%s202 + $0x8] sm:$0xf] %vm926, %v920
      %930 = vst.msk [vmem:[%s202 + $0xc] sm:$0xf] %vm926, %v921
      %931 = vst.msk [vmem:[%s202 + $0x10] sm:$0xf] %vm926, %v922
      %932 = vst.msk [vmem:[%s202 + $0x14] sm:$0xf] %vm926, %v923
      %933 = vst.msk [vmem:[%s202 + $0x18] sm:$0xf] %vm926, %v924
      %934 = vst.msk [vmem:[%s202 + $0x1c] sm:$0xf] %vm926, %v925
      %v935 = vsel %vm700, %v888, 0.0
      %v936 = vsel %vm700, %v891, 0.0
      %v937 = vadd.f32 %v935, %v936
      %v938 = vsel %vm700, %v896, 0.0
      %v939 = vadd.f32 %v937, %v938
      %v940 = vsel %vm700, %v899, 0.0
      %v941 = vadd.f32 %v939, %v940
      %v942 = vsel %vm700, %v904, 0.0
      %v943 = vadd.f32 %v941, %v942
      %v944 = vsel %vm700, %v907, 0.0
      %v945 = vadd.f32 %v943, %v944
      %v946 = vsel %vm700, %v912, 0.0
      %v947 = vadd.f32 %v945, %v946
      %v948 = vsel %vm700, %v915, 0.0
      %v949 = vadd.f32 %v947, %v948
      %v950 = vrot.slane %v949, 4
      %v951 = vadd.f32 %v949, %v950
      %v952 = vrot.slane %v951, 2
      %v953 = vadd.f32 %v951, %v952
      %v954 = vrot.slane %v953, 1
      %v955 = vadd.f32 %v953, %v954
      %v956 = vmul.f32 %v888, %v888
      %v957 = vmul.f32 %v891, %v891
      %v958 = vmul.f32 %v896, %v896
      %v959 = vmul.f32 %v899, %v899
      %v960 = vmul.f32 %v904, %v904
      %v961 = vmul.f32 %v907, %v907
      %v962 = vmul.f32 %v912, %v912
      %v963 = vmul.f32 %v915, %v915
      %v964 = vsel %vm700, %v956, 0.0
      %v965 = vsel %vm700, %v957, 0.0
      %v966 = vadd.f32 %v964, %v965
      %v967 = vsel %vm700, %v958, 0.0
      %v968 = vadd.f32 %v966, %v967
      %v969 = vsel %vm700, %v959, 0.0
      %v970 = vadd.f32 %v968, %v969
      %v971 = vsel %vm700, %v960, 0.0
      %v972 = vadd.f32 %v970, %v971
      %v973 = vsel %vm700, %v961, 0.0
      %v974 = vadd.f32 %v972, %v973
      %v975 = vsel %vm700, %v962, 0.0
      %v976 = vadd.f32 %v974, %v975
      %v977 = vsel %vm700, %v963, 0.0
      %v978 = vadd.f32 %v976, %v977
      %v979 = vrot.slane %v978, 4
      %v980 = vadd.f32 %v978, %v979
      %v981 = vrot.slane %v980, 2
      %v982 = vadd.f32 %v980, %v981
      %v983 = vrot.slane %v982, 1
      %v984 = vadd.f32 %v982, %v983
      %vm985 = vcmask 1040384
      %v986 = vsel %vm985, %v955, %v984
      %vm987 = vcmask 58368
      %988 = vst.msk [vmem:[%s208] sm:$0x3] %vm987, %v986
      %s989 = smul.u32 8, %s20
      %p990 = scmp.lt.s32.totalorder %s19, 1
      %s991 = scalar_select %p990, %s19, 1
      %p992 = scmp.lt.s32.totalorder %s989, 7
      %s993 = scalar_select %p992, %s989, 7
      %s994 = smul.addr %s991, 8
      %s995 = sadd.s32 %s993, %s994
      %s996 = smul.addr %s995, 4
      %s997 = scalar_lea.vmem %s2, %s996
      %s998 = sadd.s32 %s19, %s20
      %p999 = scmp.lt.s32.totalorder %s998, 1
      %s1000 = scalar_select %p999, %s998, 1
      %s1001 = smul.addr %s1000, 2
      %s1002 = scalar_lea.vmem %s3, %s1001
      // Predicated region
      $region37: #{down_forward.2} parent=27 // pred_check
        %p1003 = pneg %p94
      $region38: #{down_forward.2} parent=27 // pred_check_branch
        %1005 = sbr.rel (%p1003) target = $region40
      $region39: #{down_forward.2} parent=27 // pred_region
        %s1006 = smul.u32 8, %s20
      $region40: #{down_forward.2} parent=27 // pred_fallthru
        _
      // Predicated region
      $region41: #{down_forward.2} parent=27 // pred_check
        %p1007 = pneg %p122
      $region42: #{down_forward.2} parent=27 // pred_check_branch
        %1009 = sbr.rel (%p1007) target = $region44
      $region43: #{down_forward.2} parent=27 // pred_region
        %s1010 = sadd.s32 %s19, %s20
      $region44: #{down_forward.2} parent=27 // pred_fallthru
        _
    $region28: #{down_forward.2} parent=5 // pred_fallthru
      _
    %p1011 = scmp.le.s32.totalorder 2, %s10
    // Predicated region
    $region45: #{down_forward.2} parent=5 // pred_check
      %p1012 = pneg %p1011
    $region46: #{down_forward.2} parent=5 // pred_check_branch
      %1014 = sbr.rel (%p1012) target = $region48
    $region47: #{down_forward.2} parent=5 // pred_region
      %s1015 = ssub.s32 %s10, 2
      // Predicated region
      $region49: #{down_forward.2} parent=47 // pred_check
        %p1016 = pneg %p100
      $region50: #{down_forward.2} parent=47 // pred_check_branch
        %1018 = sbr.rel (%p1016) target = $region52
      $region51: #{down_forward.2} parent=47 // pred_region
        %s1019 = smul.u32 8, %s22
        %p1020 = scmp.lt.s32.totalorder %s21, 1
        %s1021 = scalar_select %p1020, %s21, 1
        %p1022 = scmp.lt.s32.totalorder %s1019, 7
        %s1023 = scalar_select %p1022, %s1019, 7
        %s1024 = smul.addr %s1021, 8
        %s1025 = sadd.s32 %s1023, %s1024
        %s1026 = smul.addr %s1025, 4
        %s1027 = scalar_lea.vmem %s2, %s1026
      $region52: #{down_forward.2} parent=47 // pred_fallthru
        _
      // Predicated region
      $region53: #{down_forward.2} parent=47 // pred_check
        %p1028 = pneg %p128
      $region54: #{down_forward.2} parent=47 // pred_check_branch
        %1030 = sbr.rel (%p1028) target = $region56
      $region55: #{down_forward.2} parent=47 // pred_region
        %s1031 = sadd.s32 %s21, %s22
        %p1032 = scmp.lt.s32.totalorder %s1031, 1
        %s1033 = scalar_select %p1032, %s1031, 1
        %s1034 = smul.addr %s1033, 2
        %s1035 = scalar_lea.vmem %s3, %s1034
      $region56: #{down_forward.2} parent=47 // pred_fallthru
        _
    $region48: #{down_forward.2} parent=5 // pred_fallthru
      _
  $region6: #{down_forward.2} parent=0 // loop_footer
    %s14 = sadd.s32 1, %s10
  $region7: #{down_forward.2} parent=0 // loop_footer_branch
    %9 = sbr.rel target = $region3
  $region8: #{down_forward.2} parent=0 // loop_exit
    _

// kernel: down_forward.3
$region0: #{down_forward.3}
  #allocation0 [shape = 'u32[]', space=smem, size = 0x4, offset = 0x4, fixed_abs, tag = 'smem constant byte address 0x4 - core index']
  #allocation1 [shape = 'u32[144,128]{1,0:T(1,128)}', space=vmem, size = 0x12000, scoped, tag = 'internal scratch']
  #allocation2 [shape = 'bf16[10,10,8]{2,1,0:T(8,128)(2,1)}', space=vmem, size = 0xa000, scoped, tag = 'scratch operand']
  %s0 = inlined_call_operand.vmem [shape: bf16[2,8,8,8], index: 0, kind: input, shape index: {}]
  %s1 = inlined_call_operand.vmem [shape: f32[1,8], index: 1, kind: input, shape index: {}]
  %s2 = inlined_call_operand.vmem [shape: f32[1,8], index: 2, kind: input, shape index: {}]
  %s3 = inlined_call_operand.vmem [shape: bf16[72,8], index: 3, kind: input, shape index: {}]
  %s4 = inlined_call_operand.vmem [shape: bf16[2,8,8,8], index: 4, kind: output, shape index: {0}]
  %s5 = inlined_call_operand.vmem [shape: f32[2,2,8], index: 5, kind: output, shape index: {1}]
  %6 = xla_tuple %s4, %s5
  %s7 = sld [smem:[#allocation0]]
  $region65: #{down_forward.3} parent=0
    _
  %s9 = ssub.s32 1, %s7
  %s10 = scalar_select 0, %s9, %s7
  loop: start=0, step=1, limit=4
  $region2: #{down_forward.3} parent=0 // loop_pre_header
    _
  $region3: #{down_forward.3} parent=0 // loop_header
    %s12 = sphi 0, %s16
    %p13 = scmp.ge.s32.totalorder %s12, 4
    %s19 = sphi 0, %s31
    %s20 = sphi 0, %s27
    %s21 = sphi 0, %s19
    %s22 = sphi 0, %s20
    %s23 = sphi 0, %s21
    %s24 = sphi 0, %s22
    %s34 = sphi 0, %s36
    %s37 = sphi 0, %s34
    %s38 = sphi 0, %s37
    %s54 = sphi 0, %s38
    %s58 = sphi 0, %s58
    %s60 = sphi 0, %s58
    %s61 = sphi 0, %s60
    %s75 = sphi 0, %s61
    %s79 = sphi 0, %s79
    %s81 = sphi 0, %s79
    %s82 = sphi 0, %s81
    %s96 = sphi 0, %s82
    %s100 = sphi 0, %s100
    %s102 = sphi 0, %s100
    %s103 = sphi 0, %s102
    %s117 = sphi 0, %s103
    %s125 = sphi 0, %s127
    %s128 = sphi 0, %s125
    %s129 = sphi 0, %s128
    %s145 = sphi 0, %s129
    %s153 = sphi 0, %s155
    %s156 = sphi 0, %s153
    %s157 = sphi 0, %s156
    %s173 = sphi 0, %s157
  $region4: #{down_forward.3} parent=0 // loop_header_branch
    %15 = sbr.rel (%p13) target = $region8
  $region5: #{down_forward.3} parent=0 // loop_body
    %s17 = ssub.s32 %s12, 1
    %s18 = ssub.s32 %s12, 2
    %s25 = sadd.s32 1, %s20
    %p26 = scmp.ge.s32.totalorder %s25, 1
    %s27 = scalar_select %p26, 0, %s25
    %s28 = sadd.s32 1, %s19
    %s29 = scalar_select %p26, %s28, %s19
    %p30 = scmp.ge.s32.totalorder %s29, 2
    %s31 = scalar_select %p30, 0, %s29
    %s32 = ssub.s32 %s19, %s31
    %p33 = scmp.eq.s32.totalorder %s32, 0
    %s35 = sadd.s32 %s34, 1
    %s36 = scalar_select %p33, %s34, %s35
    %p39 = pneg %p33
    %p40 = scmp.eq.s32.totalorder %s12, 1
    %p41 = por %p39, %p40
    %p42 = scmp.ne.s32.totalorder %s34, %s37
    %p43 = scmp.eq.s32.totalorder %s12, 0
    %p44 = por %p42, %p43
    %p45 = scmp.ne.s32.totalorder %s34, %s37
    %p46 = scmp.eq.s32.totalorder %s17, 1
    %p47 = por %p45, %p46
    %p48 = scmp.ne.s32.totalorder %s37, %s38
    %p49 = scmp.eq.s32.totalorder %s17, 0
    %p50 = por %p48, %p49
    %p51 = scmp.ne.s32.totalorder %s37, %s38
    %p52 = scmp.eq.s32.totalorder %s18, 1
    %p53 = por %p51, %p52
    %p55 = scmp.ne.s32.totalorder %s38, %s54
    %p56 = scmp.eq.s32.totalorder %s18, 0
    %p57 = por %p55, %p56
    %s59 = sadd.s32 %s58, 1
    %p62 = scmp.eq.s32.totalorder %s12, 1
    %p63 = scmp.ne.s32.totalorder %s58, %s60
    %p64 = scmp.eq.s32.totalorder %s12, 0
    %p65 = por %p63, %p64
    %p66 = scmp.ne.s32.totalorder %s58, %s60
    %p67 = scmp.eq.s32.totalorder %s17, 1
    %p68 = por %p66, %p67
    %p69 = scmp.ne.s32.totalorder %s60, %s61
    %p70 = scmp.eq.s32.totalorder %s17, 0
    %p71 = por %p69, %p70
    %p72 = scmp.ne.s32.totalorder %s60, %s61
    %p73 = scmp.eq.s32.totalorder %s18, 1
    %p74 = por %p72, %p73
    %p76 = scmp.ne.s32.totalorder %s61, %s75
    %p77 = scmp.eq.s32.totalorder %s18, 0
    %p78 = por %p76, %p77
    %s80 = sadd.s32 %s79, 1
    %p83 = scmp.eq.s32.totalorder %s12, 1
    %p84 = scmp.ne.s32.totalorder %s79, %s81
    %p85 = scmp.eq.s32.totalorder %s12, 0
    %p86 = por %p84, %p85
    %p87 = scmp.ne.s32.totalorder %s79, %s81
    %p88 = scmp.eq.s32.totalorder %s17, 1
    %p89 = por %p87, %p88
    %p90 = scmp.ne.s32.totalorder %s81, %s82
    %p91 = scmp.eq.s32.totalorder %s17, 0
    %p92 = por %p90, %p91
    %p93 = scmp.ne.s32.totalorder %s81, %s82
    %p94 = scmp.eq.s32.totalorder %s18, 1
    %p95 = por %p93, %p94
    %p97 = scmp.ne.s32.totalorder %s82, %s96
    %p98 = scmp.eq.s32.totalorder %s18, 0
    %p99 = por %p97, %p98
    %s101 = sadd.s32 %s100, 1
    %p104 = scmp.eq.s32.totalorder %s12, 1
    %p105 = scmp.ne.s32.totalorder %s100, %s102
    %p106 = scmp.eq.s32.totalorder %s12, 0
    %p107 = por %p105, %p106
    %p108 = scmp.ne.s32.totalorder %s100, %s102
    %p109 = scmp.eq.s32.totalorder %s17, 1
    %p110 = por %p108, %p109
    %p111 = scmp.ne.s32.totalorder %s102, %s103
    %p112 = scmp.eq.s32.totalorder %s17, 0
    %p113 = por %p111, %p112
    %p114 = scmp.ne.s32.totalorder %s102, %s103
    %p115 = scmp.eq.s32.totalorder %s18, 1
    %p116 = por %p114, %p115
    %p118 = scmp.ne.s32.totalorder %s103, %s117
    %p119 = scmp.eq.s32.totalorder %s18, 0
    %p120 = por %p118, %p119
    %s121 = ssub.s32 %s19, %s31
    %s122 = ssub.s32 %s20, %s27
    %s123 = sor.u32 %s121, %s122
    %p124 = scmp.eq.s32.totalorder %s123, 0
    %s126 = sadd.s32 %s125, 1
    %s127 = scalar_select %p124, %s125, %s126
    %p130 = pneg %p124
    %p131 = scmp.eq.s32.totalorder %s12, 1
    %p132 = por %p130, %p131
    %p133 = scmp.ne.s32.totalorder %s125, %s128
    %p134 = scmp.eq.s32.totalorder %s12, 0
    %p135 = por %p133, %p134
    %p136 = scmp.ne.s32.totalorder %s125, %s128
    %p137 = scmp.eq.s32.totalorder %s17, 1
    %p138 = por %p136, %p137
    %p139 = scmp.ne.s32.totalorder %s128, %s129
    %p140 = scmp.eq.s32.totalorder %s17, 0
    %p141 = por %p139, %p140
    %p142 = scmp.ne.s32.totalorder %s128, %s129
    %p143 = scmp.eq.s32.totalorder %s18, 1
    %p144 = por %p142, %p143
    %p146 = scmp.ne.s32.totalorder %s129, %s145
    %p147 = scmp.eq.s32.totalorder %s18, 0
    %p148 = por %p146, %p147
    %s149 = sadd.s32 %s19, %s20
    %s150 = sadd.s32 %s31, %s27
    %s151 = ssub.s32 %s149, %s150
    %p152 = scmp.eq.s32.totalorder %s151, 0
    %s154 = sadd.s32 %s153, 1
    %s155 = scalar_select %p152, %s153, %s154
    %p158 = pneg %p152
    %p159 = scmp.eq.s32.totalorder %s12, 1
    %p160 = por %p158, %p159
    %p161 = scmp.ne.s32.totalorder %s153, %s156
    %p162 = scmp.eq.s32.totalorder %s12, 0
    %p163 = por %p161, %p162
    %p164 = scmp.ne.s32.totalorder %s153, %s156
    %p165 = scmp.eq.s32.totalorder %s17, 1
    %p166 = por %p164, %p165
    %p167 = scmp.ne.s32.totalorder %s156, %s157
    %p168 = scmp.eq.s32.totalorder %s17, 0
    %p169 = por %p167, %p168
    %p170 = scmp.ne.s32.totalorder %s156, %s157
    %p171 = scmp.eq.s32.totalorder %s18, 1
    %p172 = por %p170, %p171
    %p174 = scmp.ne.s32.totalorder %s157, %s173
    %p175 = scmp.eq.s32.totalorder %s18, 0
    %p176 = por %p174, %p175
    %p177 = scmp.le.s32.totalorder 1, %s12
    %p178 = scmp.lt.s32.totalorder %s12, 3
    %p179 = pnand %p177, %p178
    %p180 = pneg %p179
    // Predicated region
    $region9: #{down_forward.3} parent=5 // pred_check
      _
    $region10: #{down_forward.3} parent=5 // pred_check_branch
      %182 = sbr.rel (%p179) target = $region12
    $region11: #{down_forward.3} parent=5 // pred_region
      %s183 = ssub.s32 %s12, 1
      // Predicated region
      $region13: #{down_forward.3} parent=11 // pred_check
        %p184 = pneg %p71
      $region14: #{down_forward.3} parent=11 // pred_check_branch
        %186 = sbr.rel (%p184) target = $region16
      $region15: #{down_forward.3} parent=11 // pred_region
        _
      $region16: #{down_forward.3} parent=11 // pred_fallthru
        _
      // Predicated region
      $region17: #{down_forward.3} parent=11 // pred_check
        %p187 = pneg %p92
      $region18: #{down_forward.3} parent=11 // pred_check_branch
        %189 = sbr.rel (%p187) target = $region20
      $region19: #{down_forward.3} parent=11 // pred_region
        _
      $region20: #{down_forward.3} parent=11 // pred_fallthru
        _
      // Predicated region
      $region21: #{down_forward.3} parent=11 // pred_check
        %p190 = pneg %p113
      $region22: #{down_forward.3} parent=11 // pred_check_branch
        %192 = sbr.rel (%p190) target = $region24
      $region23: #{down_forward.3} parent=11 // pred_region
        _
      $region24: #{down_forward.3} parent=11 // pred_fallthru
        _
    $region12: #{down_forward.3} parent=5 // pred_fallthru
      _
    %p193 = scmp.lt.s32.totalorder %s12, 2
    // Predicated region
    $region25: #{down_forward.3} parent=5 // pred_check
      %p194 = pneg %p193
    $region26: #{down_forward.3} parent=5 // pred_check_branch
      %196 = sbr.rel (%p194) target = $region28
    $region27: #{down_forward.3} parent=5 // pred_region
      // Predicated region
      $region29: #{down_forward.3} parent=27 // pred_check
        %p197 = pneg %p44
      $region30: #{down_forward.3} parent=27 // pred_check_branch
        %199 = sbr.rel (%p197) target = $region32
      $region31: #{down_forward.3} parent=27 // pred_region
        %p200 = scmp.lt.s32.totalorder %s19, 1
        %s201 = scalar_select %p200, %s19, 1
        %s202 = smul.addr %s201, 8
        %s203 = smul.addr %s202, 4
        %s204 = scalar_lea.vmem %s0, %s203
      $region32: #{down_forward.3} parent=27 // pred_fallthru
        _
    $region28: #{down_forward.3} parent=5 // pred_fallthru
      _
    %p205 = scmp.le.s32.totalorder 1, %s12
    %p206 = scmp.lt.s32.totalorder %s12, 3
    %p207 = pnand %p205, %p206
    %p208 = pneg %p207
    // Predicated region
    $region33: #{down_forward.3} parent=5 // pred_check
      _
    $region34: #{down_forward.3} parent=5 // pred_check_branch
      %210 = sbr.rel (%p207) target = $region36
    $region35: #{down_forward.3} parent=5 // pred_region
      %s211 = ssub.s32 %s12, 1
      %p212 = scmp.lt.s32.totalorder %s21, 1
      %s213 = scalar_select %p212, %s21, 1
      %s214 = smul.addr %s213, 8
      %s215 = smul.addr %s214, 4
      %s216 = scalar_lea.vmem %s0, %s215
      %p217 = pneg %p50
      %p218 = pneg %p47
      %p219 = pneg %p71
      %p220 = pneg %p68
      %p221 = pneg %p92
      %p222 = pneg %p89
      %p223 = pneg %p113
      %p224 = pneg %p110
      %p225 = pneg %p141
      %p226 = pneg %p138
      %s227 = smul.u32 8, %s22
      %p228 = scmp.lt.s32.totalorder %s21, 1
      %s229 = scalar_select %p228, %s21, 1
      %p230 = scmp.lt.s32.totalorder %s227, 7
      %s231 = scalar_select %p230, %s227, 7
      %s232 = smul.addr %s229, 8
      %s233 = sadd.s32 %s231, %s232
      %s234 = smul.addr %s233, 4
      %s235 = scalar_lea.vmem %s4, %s234
      %p236 = pneg %p169
      %p237 = pneg %p166
      %s238 = sadd.s32 %s21, %s22
      %p239 = scmp.lt.s32.totalorder %s238, 1
      %s240 = scalar_select %p239, %s238, 1
      %s241 = smul.addr %s240, 2
      %s242 = scalar_lea.vmem %s5, %s241
      %p243 = scmp.lt.s32.totalorder %s21, 1
      %s244 = scalar_select %p243, %s21, 1
      %s245 = smul.addr %s244, 8
      %s246 = smul.addr %s245, 4
      %s247 = scalar_lea.vmem %s0, %s246
      %s248 = smul.u32 8, %s22
      %p249 = scmp.lt.s32.totalorder %s21, 1
      %s250 = scalar_select %p249, %s21, 1
      %p251 = scmp.lt.s32.totalorder %s248, 7
      %s252 = scalar_select %p251, %s248, 7
      %s253 = smul.addr %s250, 8
      %s254 = sadd.s32 %s252, %s253
      %s255 = smul.addr %s254, 4
      %s256 = scalar_lea.vmem %s4, %s255
      %s257 = smul.u32 8, %s22
      %s258 = sadd.s32 %s21, %s22
      %p259 = scmp.lt.s32.totalorder %s258, 1
      %s260 = scalar_select %p259, %s258, 1
      %s261 = smul.addr %s260, 2
      %s262 = scalar_lea.vmem %s5, %s261
      %s263 = sadd.s32 %s21, %s22
      %s265 = smul.u32 %s22, 8
      %v266 = vld [vmem:[%s1] sm:$0x1]
      %v267 = vld [vmem:[%s2] sm:$0x1]
      %vm268 = vcmask 57344
      %vm269 = vsmask.f32 256
      %vm270 = vmand %vm268, %vm269
      %v271 = vld [vmem:[#allocation2] sm:$0x1]
      %v272 = vsel %vm270, 0, %v271
      %273 = vst [vmem:[#allocation2] sm:$0x1] %v272
      %v274 = vld [vmem:[#allocation2 + $0x8] sm:$0x1]
      %v275 = vsel %vm270, 0, %v274
      %276 = vst [vmem:[#allocation2 + $0x8] sm:$0x1] %v275
      %v277 = vld [vmem:[#allocation2 + $0x10] sm:$0x1]
      %v278 = vsel %vm270, 0, %v277
      %279 = vst [vmem:[#allocation2 + $0x10] sm:$0x1] %v278
      %v280 = vld [vmem:[#allocation2 + $0x18] sm:$0x1]
      %v281 = vsel %vm270, 0, %v280
      %282 = vst [vmem:[#allocation2 + $0x18] sm:$0x1] %v281
      %v283 = vld [vmem:[#allocation2 + $0x20] sm:$0x1]
      %v284 = vsel %vm270, 0, %v283
      %285 = vst [vmem:[#allocation2 + $0x20] sm:$0x1] %v284
      %v286 = vld [vmem:[#allocation2 + $0x28] sm:$0x1]
      %v287 = vsel %vm270, 0, %v286
      %288 = vst [vmem:[#allocation2 + $0x28] sm:$0x1] %v287
      %v289 = vld [vmem:[#allocation2 + $0x30] sm:$0x1]
      %v290 = vsel %vm270, 0, %v289
      %291 = vst [vmem:[#allocation2 + $0x30] sm:$0x1] %v290
      %v292 = vld [vmem:[#allocation2 + $0x38] sm:$0x1]
      %v293 = vsel %vm270, 0, %v292
      %294 = vst [vmem:[#allocation2 + $0x38] sm:$0x1] %v293
      %v295 = vld [vmem:[#allocation2 + $0x40] sm:$0x1]
      %v296 = vsel %vm270, 0, %v295
      %297 = vst [vmem:[#allocation2 + $0x40] sm:$0x1] %v296
      %v298 = vld [vmem:[#allocation2 + $0x48] sm:$0x1]
      %v299 = vsel %vm270, 0, %v298
      %300 = vst [vmem:[#allocation2 + $0x48] sm:$0x1] %v299
      %vm301 = vsmask.f32 7938
      %vm302 = vmand %vm268, %vm301
      %v303 = vld [vmem:[#allocation2 + $0x4] sm:$0x1]
      %v304 = vsel %vm302, 0, %v303
      %305 = vst [vmem:[#allocation2 + $0x4] sm:$0x1] %v304
      %v306 = vld [vmem:[#allocation2 + $0xc] sm:$0x1]
      %v307 = vsel %vm302, 0, %v306
      %308 = vst [vmem:[#allocation2 + $0xc] sm:$0x1] %v307
      %v309 = vld [vmem:[#allocation2 + $0x14] sm:$0x1]
      %v310 = vsel %vm302, 0, %v309
      %311 = vst [vmem:[#allocation2 + $0x14] sm:$0x1] %v310
      %v312 = vld [vmem:[#allocation2 + $0x1c] sm:$0x1]
      %v313 = vsel %vm302, 0, %v312
      %314 = vst [vmem:[#allocation2 + $0x1c] sm:$0x1] %v313
      %v315 = vld [vmem:[#allocation2 + $0x24] sm:$0x1]
      %v316 = vsel %vm302, 0, %v315
      %317 = vst [vmem:[#allocation2 + $0x24] sm:$0x1] %v316
      %v318 = vld [vmem:[#allocation2 + $0x2c] sm:$0x1]
      %v319 = vsel %vm302, 0, %v318
      %320 = vst [vmem:[#allocation2 + $0x2c] sm:$0x1] %v319
      %v321 = vld [vmem:[#allocation2 + $0x34] sm:$0x1]
      %v322 = vsel %vm302, 0, %v321
      %323 = vst [vmem:[#allocation2 + $0x34] sm:$0x1] %v322
      %v324 = vld [vmem:[#allocation2 + $0x3c] sm:$0x1]
      %v325 = vsel %vm302, 0, %v324
      %326 = vst [vmem:[#allocation2 + $0x3c] sm:$0x1] %v325
      %v327 = vld [vmem:[#allocation2 + $0x44] sm:$0x1]
      %v328 = vsel %vm302, 0, %v327
      %329 = vst [vmem:[#allocation2 + $0x44] sm:$0x1] %v328
      %v330 = vld [vmem:[#allocation2 + $0x4c] sm:$0x1]
      %v331 = vsel %vm302, 0, %v330
      %332 = vst [vmem:[#allocation2 + $0x4c] sm:$0x1] %v331
      %vm333 = vcmask 60416
      %vm334 = vmand %vm333, %vm301
      %v335 = vld [vmem:[#allocation2] sm:$0xf]
      %v336 = vsel %vm334, 0, %v335
      %337 = vst [vmem:[#allocation2] sm:$0xf] %v336
      %v338 = vld [vmem:[#allocation2 + $0x4] sm:$0x1]
      %v339 = vsel %vm270, 0, %v338
      %340 = vst [vmem:[#allocation2 + $0x4] sm:$0x1] %v339
      %s341 = scalar_lea.vmem [#allocation2], 72
      %v342 = vld [vmem:[%s341] sm:$0xf]
      %v343 = vsel %vm334, 0, %v342
      %344 = vst [vmem:[%s341] sm:$0xf] %v343
      %v345 = vld [vmem:[%s341 + $0x4] sm:$0x1]
      %v346 = vsel %vm270, 0, %v345
      %347 = vst [vmem:[%s341 + $0x4] sm:$0x1] %v346
      %s348 = smul.addr %s265, 4
      %s349 = scalar_lea.vmem %s247, %s348
      %v350 = vld [vmem:[%s349] sm:$0xf]
      %v351 = vld [vmem:[%s349 + $0x4] sm:$0xf]
      %v352 = vld [vmem:[%s349 + $0x8] sm:$0xf]
      %v353 = vld [vmem:[%s349 + $0xc] sm:$0xf]
      %v354 = vld [vmem:[%s349 + $0x10] sm:$0xf]
      %v355 = vld [vmem:[%s349 + $0x14] sm:$0xf]
      %v356 = vld [vmem:[%s349 + $0x18] sm:$0xf]
      %v357 = vld [vmem:[%s349 + $0x1c] sm:$0xf]
      %v358 = vunpack.c.l.bf16 %v350
      %v359 = vunpack.c.l.bf16 %v351
      %v360 = vunpack.c.l.bf16 %v352
      %v361 = vunpack.c.l.bf16 %v353
      %v362 = vunpack.c.l.bf16 %v354
      %v363 = vunpack.c.l.bf16 %v355
      %v364 = vunpack.c.l.bf16 %v356
      %v365 = vunpack.c.l.bf16 %v357
      %v367 = vlaneseq
      %v368 = vshrl.u32 %v367, 7
      %v369 = vsub.s32 0, %v368
      %v370 = vrot.slane %v266, %v369
      %v372 = vmul.f32 %v358, %v370
      %v373 = vmul.f32 %v359, %v370
      %v374 = vmul.f32 %v360, %v370
      %v375 = vmul.f32 %v361, %v370
      %v376 = vmul.f32 %v362, %v370
      %v377 = vmul.f32 %v363, %v370
      %v378 = vmul.f32 %v364, %v370
      %v379 = vmul.f32 %v365, %v370
      %v381 = vlaneseq
      %v382 = vshrl.u32 %v381, 7
      %v383 = vsub.s32 0, %v382
      %v384 = vrot.slane %v267, %v383
      %v386 = vadd.f32 %v372, %v384
      %v387 = vadd.f32 %v373, %v384
      %v388 = vadd.f32 %v374, %v384
      %v389 = vadd.f32 %v375, %v384
      %v390 = vadd.f32 %v376, %v384
      %v391 = vadd.f32 %v377, %v384
      %v392 = vadd.f32 %v378, %v384
      %v393 = vadd.f32 %v379, %v384
      %v394 = vmax.f32 %v386, 0.0
      %v395 = vmax.f32 %v387, 0.0
      %v396 = vmax.f32 %v388, 0.0
      %v397 = vmax.f32 %v389, 0.0
      %v398 = vmax.f32 %v390, 0.0
      %v399 = vmax.f32 %v391, 0.0
      %v400 = vmax.f32 %v392, 0.0
      %v401 = vmax.f32 %v393, 0.0
      %v402 = vpack.c.bf16 %v394, %v394
      %v403 = vpack.c.bf16 %v395, %v395
      %v404 = vpack.c.bf16 %v396, %v396
      %v405 = vpack.c.bf16 %v397, %v397
      %v406 = vpack.c.bf16 %v398, %v398
      %v407 = vpack.c.bf16 %v399, %v399
      %v408 = vpack.c.bf16 %v400, %v400
      %v409 = vpack.c.bf16 %v401, %v401
      %v418 = vunpack.c.l.b16 %v402
      %v419 = vunpack.c.l.b16 %v403
      %v420 = vunpack.c.l.b16 %v404
      %v421 = vunpack.c.l.b16 %v405
      %v422 = vunpack.c.l.b16 %v406
      %v423 = vunpack.c.l.b16 %v407
      %v424 = vunpack.c.l.b16 %v408
      %v425 = vunpack.c.l.b16 %v409
      %v426 = vpack.c.b16 %v418, %v418
      %v427 = vpack.c.b16 %v419, %v419
      %v428 = vpack.c.b16 %v420, %v420
      %v429 = vpack.c.b16 %v421, %v421
      %v430 = vpack.c.b16 %v422, %v422
      %v431 = vpack.c.b16 %v423, %v423
      %v432 = vpack.c.b16 %v424, %v424
      %v433 = vpack.c.b16 %v425, %v425
      %v435 = vshrl.u32 %v426, 16
      %v437 = vrot.slane %v435, 7
      %v438 = vshll.u32 %v426, 16
      %v440 = vor.u32 %v437, %v438
      %v441 = vrot.slane %v437, 4
      %v443 = vshrl.u32 %v427, 16
      %v445 = vrot.slane %v443, 7
      %v446 = vshll.u32 %v427, 16
      %v448 = vor.u32 %v445, %v446
      %v449 = vrot.slane %v445, 4
      %v451 = vshrl.u32 %v428, 16
      %v453 = vrot.slane %v451, 7
      %v454 = vshll.u32 %v428, 16
      %v456 = vor.u32 %v453, %v454
      %v457 = vrot.slane %v453, 4
      %v459 = vshrl.u32 %v429, 16
      %v461 = vrot.slane %v459, 7
      %v462 = vshll.u32 %v429, 16
      %v464 = vor.u32 %v461, %v462
      %v465 = vrot.slane %v461, 4
      %v467 = vshrl.u32 %v430, 16
      %v469 = vrot.slane %v467, 7
      %v470 = vshll.u32 %v430, 16
      %v472 = vor.u32 %v469, %v470
      %v473 = vrot.slane %v469, 4
      %v475 = vshrl.u32 %v431, 16
      %v477 = vrot.slane %v475, 7
      %v478 = vshll.u32 %v431, 16
      %v480 = vor.u32 %v477, %v478
      %v481 = vrot.slane %v477, 4
      %v483 = vshrl.u32 %v432, 16
      %v485 = vrot.slane %v483, 7
      %v486 = vshll.u32 %v432, 16
      %v488 = vor.u32 %v485, %v486
      %v489 = vrot.slane %v485, 4
      %v491 = vshrl.u32 %v433, 16
      %v493 = vrot.slane %v491, 7
      %v494 = vshll.u32 %v433, 16
      %v496 = vor.u32 %v493, %v494
      %v497 = vrot.slane %v493, 4
      %s514 = scalar_lea.vmem [#allocation2], 8
      %v515 = vld [vmem:[%s514] sm:$0xf]
      %v516 = vsel %vm334, %v440, %v515
      %517 = vst [vmem:[%s514] sm:$0xf] %v516
      %v518 = vld [vmem:[%s514 + $0x4] sm:$0x1]
      %v519 = vsel %vm270, %v441, %v518
      %520 = vst [vmem:[%s514 + $0x4] sm:$0x1] %v519
      %v521 = vld [vmem:[%s514 + $0x8] sm:$0xf]
      %v522 = vsel %vm334, %v448, %v521
      %523 = vst [vmem:[%s514 + $0x8] sm:$0xf] %v522
      %v524 = vld [vmem:[%s514 + $0xc] sm:$0x1]
      %v525 = vsel %vm270, %v449, %v524
      %526 = vst [vmem:[%s514 + $0xc] sm:$0x1] %v525
      %v527 = vld [vmem:[%s514 + $0x10] sm:$0xf]
      %v528 = vsel %vm334, %v456, %v527
      %529 = vst [vmem:[%s514 + $0x10] sm:$0xf] %v528
      %v530 = vld [vmem:[%s514 + $0x14] sm:$0x1]
      %v531 = vsel %vm270, %v457, %v530
      %532 = vst [vmem:[%s514 + $0x14] sm:$0x1] %v531
      %v533 = vld [vmem:[%s514 + $0x18] sm:$0xf]
      %v534 = vsel %vm334, %v464, %v533
      %535 = vst [vmem:[%s514 + $0x18] sm:$0xf] %v534
      %v536 = vld [vmem:[%s514 + $0x1c] sm:$0x1]
      %v537 = vsel %vm270, %v465, %v536
      %538 = vst [vmem:[%s514 + $0x1c] sm:$0x1] %v537
      %v539 = vld [vmem:[%s514 + $0x20] sm:$0xf]
      %v540 = vsel %vm334, %v472, %v539
      %541 = vst [vmem:[%s514 + $0x20] sm:$0xf] %v540
      %v542 = vld [vmem:[%s514 + $0x24] sm:$0x1]
      %v543 = vsel %vm270, %v473, %v542
      %544 = vst [vmem:[%s514 + $0x24] sm:$0x1] %v543
      %v545 = vld [vmem:[%s514 + $0x28] sm:$0xf]
      %v546 = vsel %vm334, %v480, %v545
      %547 = vst [vmem:[%s514 + $0x28] sm:$0xf] %v546
      %v548 = vld [vmem:[%s514 + $0x2c] sm:$0x1]
      %v549 = vsel %vm270, %v481, %v548
      %550 = vst [vmem:[%s514 + $0x2c] sm:$0x1] %v549
      %v551 = vld [vmem:[%s514 + $0x30] sm:$0xf]
      %v552 = vsel %vm334, %v488, %v551
      %553 = vst [vmem:[%s514 + $0x30] sm:$0xf] %v552
      %v554 = vld [vmem:[%s514 + $0x34] sm:$0x1]
      %v555 = vsel %vm270, %v489, %v554
      %556 = vst [vmem:[%s514 + $0x34] sm:$0x1] %v555
      %v557 = vld [vmem:[%s514 + $0x38] sm:$0xf]
      %v558 = vsel %vm334, %v496, %v557
      %559 = vst [vmem:[%s514 + $0x38] sm:$0xf] %v558
      %v560 = vld [vmem:[%s514 + $0x3c] sm:$0x1]
      %v561 = vsel %vm270, %v497, %v560
      %562 = vst [vmem:[%s514 + $0x3c] sm:$0x1] %v561
      %p563 = scmp.gt.s32.totalorder %s22, 0
      // Predicated region
      $region37: #{down_forward.3} parent=35 // pred_check
        %p564 = pneg %p563
      $region38: #{down_forward.3} parent=35 // pred_check_branch
        %566 = sbr.rel (%p564) target = $region40
      $region39: #{down_forward.3} parent=35 // pred_region
        %s567 = ssub.s32 %s265, 1
        %s568 = smul.addr %s567, 4
        %s569 = scalar_lea.vmem %s247, %s568
        %v570 = vld [vmem:[%s569] sm:$0xf]
        %v571 = vunpack.c.l.bf16 %v570
        %v572 = vmul.f32 %v571, %v370
        %v573 = vadd.f32 %v572, %v384
        %v574 = vmax.f32 %v573, 0.0
        %v575 = vpack.c.bf16 %v574, %v574
        %v577 = vunpack.c.l.b16 %v575
        %v578 = vpack.c.b16 %v577, %v577
        %v580 = vshrl.u32 %v578, 16
        %v582 = vrot.slane %v580, 7
        %v583 = vshll.u32 %v578, 16
        %v585 = vor.u32 %v582, %v583
        %v586 = vrot.slane %v582, 4
        %v589 = vld [vmem:[#allocation2] sm:$0xf]
        %v590 = vsel %vm334, %v585, %v589
        %591 = vst [vmem:[#allocation2] sm:$0xf] %v590
        %v592 = vld [vmem:[#allocation2 + $0x4] sm:$0x1]
        %v593 = vsel %vm270, %v586, %v592
        %594 = vst [vmem:[#allocation2 + $0x4] sm:$0x1] %v593
      $region40: #{down_forward.3} parent=35 // pred_fallthru
        _
      %p595 = scmp.lt.s32.totalorder %s22, 0
      // Predicated region
      $region41: #{down_forward.3} parent=35 // pred_check
        %p596 = pneg %p595
      $region42: #{down_forward.3} parent=35 // pred_check_branch
        %598 = sbr.rel (%p596) target = $region44
      $region43: #{down_forward.3} parent=35 // pred_region
        %s599 = sadd.s32 %s265, 8
        %s600 = smul.addr %s599, 4
        %s601 = scalar_lea.vmem %s247, %s600
        %v602 = vld [vmem:[%s601] sm:$0xf]
        %v603 = vunpack.c.l.bf16 %v602
        %v604 = vmul.f32 %v603, %v370
        %v605 = vadd.f32 %v604, %v384
        %v606 = vmax.f32 %v605, 0.0
        %v607 = vpack.c.bf16 %v606, %v606
        %v609 = vunpack.c.l.b16 %v607
        %v610 = vpack.c.b16 %v609, %v609
        %v612 = vshrl.u32 %v610, 16
        %v614 = vrot.slane %v612, 7
        %v615 = vshll.u32 %v610, 16
        %v617 = vor.u32 %v614, %v615
        %v618 = vrot.slane %v614, 4
        %v621 = vld [vmem:[%s341] sm:$0xf]
        %v622 = vsel %vm334, %v617, %v621
        %623 = vst [vmem:[%s341] sm:$0xf] %v622
        %v624 = vld [vmem:[%s341 + $0x4] sm:$0x1]
        %v625 = vsel %vm270, %v618, %v624
        %626 = vst [vmem:[%s341 + $0x4] sm:$0x1] %v625
      $region44: #{down_forward.3} parent=35 // pred_fallthru
        _
      %v627 = vld [vmem:[#allocation2] sm:$0xf]
      %v628 = vld [vmem:[#allocation2 + $0x4] sm:$0x1]
      %v629 = vld [vmem:[#allocation2 + $0x8] sm:$0xf]
      %v630 = vld [vmem:[#allocation2 + $0xc] sm:$0x1]
      %v631 = vld [vmem:[#allocation2 + $0x10] sm:$0xf]
      %v632 = vld [vmem:[#allocation2 + $0x14] sm:$0x1]
      %v633 = vld [vmem:[#allocation2 + $0x18] sm:$0xf]
      %v634 = vld [vmem:[#allocation2 + $0x1c] sm:$0x1]
      %v635 = vld [vmem:[#allocation2 + $0x20] sm:$0xf]
      %v636 = vld [vmem:[#allocation2 + $0x24] sm:$0x1]
      %v637 = vld [vmem:[#allocation2 + $0x28] sm:$0xf]
      %v638 = vld [vmem:[#allocation2 + $0x2c] sm:$0x1]
      %v639 = vld [vmem:[#allocation2 + $0x30] sm:$0xf]
      %v640 = vld [vmem:[#allocation2 + $0x34] sm:$0x1]
      %v641 = vld [vmem:[#allocation2 + $0x38] sm:$0xf]
      %v642 = vld [vmem:[#allocation2 + $0x3c] sm:$0x1]
      %v643 = vld [vmem:[#allocation2 + $0x40] sm:$0xf]
      %v644 = vld [vmem:[#allocation2 + $0x44] sm:$0x1]
      %v645 = vld [vmem:[#allocation2 + $0x48] sm:$0xf]
      %v646 = vld [vmem:[#allocation2 + $0x4c] sm:$0x1]
      %v667 = vunpack.c.l.b16 %v627
      %v668 = vunpack.c.l.b16 %v628
      %v669 = vunpack.c.l.b16 %v629
      %v670 = vunpack.c.l.b16 %v630
      %v671 = vunpack.c.l.b16 %v631
      %v672 = vunpack.c.l.b16 %v632
      %v673 = vunpack.c.l.b16 %v633
      %v674 = vunpack.c.l.b16 %v634
      %v675 = vunpack.c.l.b16 %v635
      %v676 = vunpack.c.l.b16 %v636
      %v677 = vunpack.c.l.b16 %v637
      %v678 = vunpack.c.l.b16 %v638
      %v679 = vunpack.c.l.b16 %v639
      %v680 = vunpack.c.l.b16 %v640
      %v681 = vunpack.c.l.b16 %v641
      %v682 = vunpack.c.l.b16 %v642
      %v683 = vunpack.c.l.b16 %v643
      %v684 = vunpack.c.l.b16 %v644
      %v685 = vunpack.c.l.b16 %v645
      %v686 = vunpack.c.l.b16 %v646
      %v687 = vpack.c.b16 %v668, %v667
      %v688 = vpack.c.b16 %v670, %v669
      %v689 = vpack.c.b16 %v672, %v671
      %v690 = vpack.c.b16 %v674, %v673
      %v691 = vpack.c.b16 %v676, %v675
      %v692 = vpack.c.b16 %v678, %v677
      %v693 = vpack.c.b16 %v680, %v679
      %v694 = vpack.c.b16 %v682, %v681
      %v695 = vpack.c.b16 %v684, %v683
      %v696 = vpack.c.b16 %v686, %v685
      %v698 = vshrl.u32 %v687, 16
      %v700 = vshll.u32 %v687, 16
      %v702 = vrot.slane %v700, 1
      %v703 = vor.u32 %v698, %v702
      %v705 = vshrl.u32 %v688, 16
      %v707 = vshll.u32 %v688, 16
      %v709 = vrot.slane %v707, 1
      %v710 = vor.u32 %v705, %v709
      %v712 = vshrl.u32 %v689, 16
      %v714 = vshll.u32 %v689, 16
      %v716 = vrot.slane %v714, 1
      %v717 = vor.u32 %v712, %v716
      %v719 = vshrl.u32 %v690, 16
      %v721 = vshll.u32 %v690, 16
      %v723 = vrot.slane %v721, 1
      %v724 = vor.u32 %v719, %v723
      %v726 = vshrl.u32 %v691, 16
      %v728 = vshll.u32 %v691, 16
      %v730 = vrot.slane %v728, 1
      %v731 = vor.u32 %v726, %v730
      %v733 = vshrl.u32 %v692, 16
      %v735 = vshll.u32 %v692, 16
      %v737 = vrot.slane %v735, 1
      %v738 = vor.u32 %v733, %v737
      %v740 = vshrl.u32 %v693, 16
      %v742 = vshll.u32 %v693, 16
      %v744 = vrot.slane %v742, 1
      %v745 = vor.u32 %v740, %v744
      %v747 = vshrl.u32 %v694, 16
      %v749 = vshll.u32 %v694, 16
      %v751 = vrot.slane %v749, 1
      %v752 = vor.u32 %v747, %v751
      %v754 = vshrl.u32 %v695, 16
      %v756 = vshll.u32 %v695, 16
      %v758 = vrot.slane %v756, 1
      %v759 = vor.u32 %v754, %v758
      %v761 = vshrl.u32 %v696, 16
      %v763 = vshll.u32 %v696, 16
      %v765 = vrot.slane %v763, 1
      %v766 = vor.u32 %v761, %v765
      %767 = vrot.lane.b32.xlu0 %v703, 8
      %v768 = vpop.permute.xlu0 %767
      %769 = vrot.lane.b32.xlu0 %v710, 8
      %v770 = vpop.permute.xlu0 %769
      %771 = vrot.lane.b32.xlu0 %v717, 8
      %v772 = vpop.permute.xlu0 %771
      %773 = vrot.lane.b32.xlu0 %v724, 8
      %v774 = vpop.permute.xlu0 %773
      %775 = vrot.lane.b32.xlu0 %v731, 8
      %v776 = vpop.permute.xlu0 %775
      %777 = vrot.lane.b32.xlu0 %v738, 8
      %v778 = vpop.permute.xlu0 %777
      %779 = vrot.lane.b32.xlu0 %v745, 8
      %v780 = vpop.permute.xlu0 %779
      %781 = vrot.lane.b32.xlu0 %v752, 8
      %v782 = vpop.permute.xlu0 %781
      %783 = vrot.lane.b32.xlu0 %v759, 8
      %v784 = vpop.permute.xlu0 %783
      %785 = vrot.lane.b32.xlu0 %v766, 8
      %v786 = vpop.permute.xlu0 %785
      %v787 = vrot.slane %v687, 1
      %v788 = vrot.slane %v688, 1
      %v789 = vrot.slane %v689, 1
      %v790 = vrot.slane %v690, 1
      %v791 = vrot.slane %v691, 1
      %v792 = vrot.slane %v692, 1
      %v793 = vrot.slane %v693, 1
      %v794 = vrot.slane %v694, 1
      %v795 = vrot.slane %v695, 1
      %v796 = vrot.slane %v696, 1
      %797 = vrot.lane.b32.xlu0 %v787, 16
      %v798 = vpop.permute.xlu0 %797
      %799 = vrot.lane.b32.xlu0 %v788, 16
      %v800 = vpop.permute.xlu0 %799
      %801 = vrot.lane.b32.xlu0 %v789, 16
      %v802 = vpop.permute.xlu0 %801
      %803 = vrot.lane.b32.xlu0 %v790, 16
      %v804 = vpop.permute.xlu0 %803
      %805 = vrot.lane.b32.xlu0 %v791, 16
      %v806 = vpop.permute.xlu0 %805
      %807 = vrot.lane.b32.xlu0 %v792, 16
      %v808 = vpop.permute.xlu0 %807
      %809 = vrot.lane.b32.xlu0 %v793, 16
      %v810 = vpop.permute.xlu0 %809
      %811 = vrot.lane.b32.xlu0 %v794, 16
      %v812 = vpop.permute.xlu0 %811
      %813 = vrot.lane.b32.xlu0 %v795, 16
      %v814 = vpop.permute.xlu0 %813
      %815 = vrot.lane.b32.xlu0 %v796, 16
      %v816 = vpop.permute.xlu0 %815
      %vm817 = vcmask 64512
      %v820 = vsel %vm817, %v627, %v768
      %v823 = vsel %vm817, %v629, %v770
      %v826 = vsel %vm817, %v631, %v772
      %v829 = vsel %vm817, %v633, %v774
      %v832 = vsel %vm817, %v635, %v776
      %v835 = vsel %vm817, %v637, %v778
      %v838 = vsel %vm817, %v639, %v780
      %v841 = vsel %vm817, %v641, %v782
      %v844 = vsel %vm817, %v643, %v784
      %v847 = vsel %vm817, %v645, %v786
      %vm848 = vcmask 130048
      %v850 = vsel %vm848, %v820, %v798
      %v852 = vsel %vm848, %v823, %v800
      %v854 = vsel %vm848, %v826, %v802
      %v856 = vsel %vm848, %v829, %v804
      %v858 = vsel %vm848, %v832, %v806
      %v860 = vsel %vm848, %v835, %v808
      %v862 = vsel %vm848, %v838, %v810
      %v864 = vsel %vm848, %v841, %v812
      %v866 = vsel %vm848, %v844, %v814
      %v868 = vsel %vm848, %v847, %v816
      %877 = vrot.lane.b32.xlu0 %v852, 24
      %v878 = vpop.permute.xlu0 %877
      %879 = vrot.lane.b32.xlu0 %v854, 24
      %v880 = vpop.permute.xlu0 %879
      %881 = vrot.lane.b32.xlu0 %v856, 24
      %v882 = vpop.permute.xlu0 %881
      %883 = vrot.lane.b32.xlu0 %v858, 24
      %v884 = vpop.permute.xlu0 %883
      %885 = vrot.lane.b32.xlu0 %v860, 24
      %v886 = vpop.permute.xlu0 %885
      %887 = vrot.lane.b32.xlu0 %v862, 24
      %v888 = vpop.permute.xlu0 %887
      %889 = vrot.lane.b32.xlu0 %v864, 24
      %v890 = vpop.permute.xlu0 %889
      %891 = vrot.lane.b32.xlu0 %v866, 24
      %v892 = vpop.permute.xlu0 %891
      %894 = vrot.lane.b32.xlu0 %v854, 48
      %v895 = vpop.permute.xlu0 %894
      %896 = vrot.lane.b32.xlu0 %v856, 48
      %v897 = vpop.permute.xlu0 %896
      %898 = vrot.lane.b32.xlu0 %v858, 48
      %v899 = vpop.permute.xlu0 %898
      %900 = vrot.lane.b32.xlu0 %v860, 48
      %v901 = vpop.permute.xlu0 %900
      %902 = vrot.lane.b32.xlu0 %v862, 48
      %v903 = vpop.permute.xlu0 %902
      %904 = vrot.lane.b32.xlu0 %v864, 48
      %v905 = vpop.permute.xlu0 %904
      %906 = vrot.lane.b32.xlu0 %v866, 48
      %v907 = vpop.permute.xlu0 %906
      %908 = vrot.lane.b32.xlu0 %v868, 48
      %v909 = vpop.permute.xlu0 %908
      %vm910 = vcmask 195584
      %v912 = vsel %vm910, %v850, %v878
      %v914 = vsel %vm910, %v852, %v880
      %v916 = vsel %vm910, %v854, %v882
      %v918 = vsel %vm910, %v856, %v884
      %v920 = vsel %vm910, %v858, %v886
      %v922 = vsel %vm910, %v860, %v888
      %v924 = vsel %vm910, %v862, %v890
      %v926 = vsel %vm910, %v864, %v892
      %vm927 = vcmask 392192
      %v929 = vsel %vm927, %v912, %v895
      %v931 = vsel %vm927, %v914, %v897
      %v933 = vsel %vm927, %v916, %v899
      %v935 = vsel %vm927, %v918, %v901
      %v937 = vsel %vm927, %v920, %v903
      %v939 = vsel %vm927, %v922, %v905
      %v941 = vsel %vm927, %v924, %v907
      %v943 = vsel %vm927, %v926, %v909
      %v944 = vld [vmem:[%s3] sm:$0xf]
      %v945 = vld [vmem:[%s3 + $0x4] sm:$0xf]
      %v946 = vld [vmem:[%s3 + $0x8] sm:$0xf]
      %v947 = vld [vmem:[%s3 + $0xc] sm:$0xf]
      %v948 = vld [vmem:[%s3 + $0x10] sm:$0xf]
      %v949 = vld [vmem:[%s3 + $0x14] sm:$0xf]
      %v950 = vld [vmem:[%s3 + $0x18] sm:$0xf]
      %v951 = vld [vmem:[%s3 + $0x1c] sm:$0xf]
      %v952 = vld [vmem:[%s3 + $0x20] sm:$0xf]
      %v961 = vunpack.c.l.b16 %v929
      %v962 = vunpack.c.l.b16 %v931
      %v963 = vunpack.c.l.b16 %v933
      %v964 = vunpack.c.l.b16 %v935
      %v965 = vunpack.c.l.b16 %v937
      %v966 = vunpack.c.l.b16 %v939
      %v967 = vunpack.c.l.b16 %v941
      %v968 = vunpack.c.l.b16 %v943
      %v969 = vpack.c.b16 %v962, %v961
      %v970 = vpack.c.b16 %v964, %v963
      %v971 = vpack.c.b16 %v966, %v965
      %v972 = vpack.c.b16 %v968, %v967
      %v982 = vunpack.c.l.b16 %v944
      %v983 = vunpack.c.l.b16 %v945
      %v984 = vunpack.c.l.b16 %v946
      %v985 = vunpack.c.l.b16 %v947
      %v986 = vunpack.c.l.b16 %v948
      %v987 = vunpack.c.l.b16 %v949
      %v988 = vunpack.c.l.b16 %v950
      %v989 = vunpack.c.l.b16 %v951
      %v990 = vunpack.c.l.b16 %v952
      %v991 = vpack.c.b16 %v983, %v982
      %v992 = vpack.c.b16 %v985, %v984
      %v993 = vpack.c.b16 %v987, %v986
      %v994 = vpack.c.b16 %v989, %v988
      %v995 = vpack.c.b16 %v990, %v990
      %vm1000 = vcmask 588800
      %v1002 = vsel %vm1000, %v969, 0
      %v1005 = vsel %vm1000, %v970, 0
      %v1008 = vsel %vm1000, %v971, 0
      %v1011 = vsel %vm1000, %v972, 0
      %vm1013 = vcmask 1043456
      %v1015 = vsel %vm1013, %v995, 0
      %1017 = vmatprep.subr.bf16.mxu0 0
      %1018 = vmatpush1.bf16.msra.mxu0 0
      %1019 = vmatprep.subr.bf16.mxu0 0
      %1020 = vmatpush1.bf16.msra.mxu0 0
      %1021 = vmatprep.subr.bf16.mxu0 0
      %1022 = vmatpush1.bf16.msra.mxu0 0
      %1023 = vmatprep.subr.bf16.mxu0 0
      %1024 = vmatpush1.bf16.msra.mxu0 %v1015
      %1025 = vmatprep.subr.bf16.mxu0 0
      %1026 = vmatpush1.bf16.msra.mxu0 %v994
      %1027 = vmatprep.subr.bf16.mxu0 0
      %1028 = vmatpush1.bf16.msra.mxu0 %v993
      %1029 = vmatprep.subr.bf16.mxu0 0
      %1030 = vmatpush1.bf16.msra.mxu0 %v992
      %1031 = vmatprep.subr.bf16.mxu0 0
      %1032 = vmatpush1.bf16.msra.mxu0 %v991
      %1033 = vmatprep.subr.bf16.mxu0 0
      %1034 = vmatpush2.bf16.msra.mxu0 0
      %1035 = vmatprep.subr.bf16.mxu0 0
      %1036 = vmatpush2.bf16.msra.mxu0 0
      %1037 = vmatprep.subr.bf16.mxu0 0
      %1038 = vmatpush2.bf16.msra.mxu0 0
      %1039 = vmatprep.subr.bf16.mxu0 0
      %1040 = vmatpush2.bf16.msra.mxu0 0
      %1041 = vmatprep.subr.bf16.mxu0 0
      %1042 = vmatpush2.bf16.msra.mxu0 0
      %1043 = vmatprep.subr.bf16.mxu0 0
      %1044 = vmatpush2.bf16.msra.mxu0 0
      %1045 = vmatprep.subr.bf16.mxu0 0
      %1046 = vmatpush2.bf16.msra.mxu0 0
      %1047 = vmatprep.subr.bf16.mxu0 0
      %1048 = vmatpush2.bf16.msra.mxu0 0
      %1049 = vmatprep.mubr.bf16.mxu0 0
      %1050 = vmatmul.mubr.bf16.gmra.mxu0 %v1002
      %v1051 = vpop.f32.mrf.mxu0
      %v1052 = vadd.f32 0.0, %v1051
      %v1053 = vpop.f32.mrf.mxu0
      %v1054 = vpop.f32.mrf.mxu0
      %v1055 = vadd.f32 0.0, %v1054
      %v1056 = vpop.f32.mrf.mxu0
      %1057 = vmatprep.mubr.bf16.mxu0 0
      %1058 = vmatmul.mubr.bf16.gmra.mxu0 %v1005
      %v1059 = vpop.f32.mrf.mxu0
      %v1060 = vadd.f32 0.0, %v1059
      %v1061 = vpop.f32.mrf.mxu0
      %v1062 = vpop.f32.mrf.mxu0
      %v1063 = vadd.f32 0.0, %v1062
      %v1064 = vpop.f32.mrf.mxu0
      %1065 = vmatprep.mubr.bf16.mxu0 0
      %1066 = vmatmul.mubr.bf16.gmra.mxu0 %v1008
      %v1067 = vpop.f32.mrf.mxu0
      %v1068 = vadd.f32 0.0, %v1067
      %v1069 = vpop.f32.mrf.mxu0
      %v1070 = vpop.f32.mrf.mxu0
      %v1071 = vadd.f32 0.0, %v1070
      %v1072 = vpop.f32.mrf.mxu0
      %1073 = vmatprep.mubr.bf16.mxu0 0
      %1074 = vmatmul.mubr.bf16.gmra.mxu0 %v1011
      %v1075 = vpop.f32.mrf.mxu0
      %v1076 = vadd.f32 0.0, %v1075
      %v1077 = vpop.f32.mrf.mxu0
      %v1078 = vpop.f32.mrf.mxu0
      %v1079 = vadd.f32 0.0, %v1078
      %v1080 = vpop.f32.mrf.mxu0
      %1081 = vdwg.mxu0
      %v1082 = vpack.c.bf16 %v1052, %v1052
      %v1083 = vpack.c.bf16 %v1055, %v1055
      %v1084 = vpack.c.bf16 %v1060, %v1060
      %v1085 = vpack.c.bf16 %v1063, %v1063
      %v1086 = vpack.c.bf16 %v1068, %v1068
      %v1087 = vpack.c.bf16 %v1071, %v1071
      %v1088 = vpack.c.bf16 %v1076, %v1076
      %v1089 = vpack.c.bf16 %v1079, %v1079
      %vm1090 = vcmask 60416
      %1091 = vst.msk [vmem:[%s256] sm:$0xf] %vm1090, %v1082
      %1092 = vst.msk [vmem:[%s256 + $0x4] sm:$0xf] %vm1090, %v1083
      %1093 = vst.msk [vmem:[%s256 + $0x8] sm:$0xf] %vm1090, %v1084
      %1094 = vst.msk [vmem:[%s256 + $0xc] sm:$0xf] %vm1090, %v1085
      %1095 = vst.msk [vmem:[%s256 + $0x10] sm:$0xf] %vm1090, %v1086
      %1096 = vst.msk [vmem:[%s256 + $0x14] sm:$0xf] %vm1090, %v1087
      %1097 = vst.msk [vmem:[%s256 + $0x18] sm:$0xf] %vm1090, %v1088
      %1098 = vst.msk [vmem:[%s256 + $0x1c] sm:$0xf] %vm1090, %v1089
      %v1099 = vsel %vm817, %v1052, 0.0
      %v1100 = vsel %vm817, %v1055, 0.0
      %v1101 = vadd.f32 %v1099, %v1100
      %v1102 = vsel %vm817, %v1060, 0.0
      %v1103 = vadd.f32 %v1101, %v1102
      %v1104 = vsel %vm817, %v1063, 0.0
      %v1105 = vadd.f32 %v1103, %v1104
      %v1106 = vsel %vm817, %v1068, 0.0
      %v1107 = vadd.f32 %v1105, %v1106
      %v1108 = vsel %vm817, %v1071, 0.0
      %v1109 = vadd.f32 %v1107, %v1108
      %v1110 = vsel %vm817, %v1076, 0.0
      %v1111 = vadd.f32 %v1109, %v1110
      %v1112 = vsel %vm817, %v1079, 0.0
      %v1113 = vadd.f32 %v1111, %v1112
      %v1114 = vrot.slane %v1113, 4
      %v1115 = vadd.f32 %v1113, %v1114
      %v1116 = vrot.slane %v1115, 2
      %v1117 = vadd.f32 %v1115, %v1116
      %v1118 = vrot.slane %v1117, 1
      %v1119 = vadd.f32 %v1117, %v1118
      %v1120 = vmul.f32 %v1052, %v1052
      %v1121 = vmul.f32 %v1055, %v1055
      %v1122 = vmul.f32 %v1060, %v1060
      %v1123 = vmul.f32 %v1063, %v1063
      %v1124 = vmul.f32 %v1068, %v1068
      %v1125 = vmul.f32 %v1071, %v1071
      %v1126 = vmul.f32 %v1076, %v1076
      %v1127 = vmul.f32 %v1079, %v1079
      %v1128 = vsel %vm817, %v1120, 0.0
      %v1129 = vsel %vm817, %v1121, 0.0
      %v1130 = vadd.f32 %v1128, %v1129
      %v1131 = vsel %vm817, %v1122, 0.0
      %v1132 = vadd.f32 %v1130, %v1131
      %v1133 = vsel %vm817, %v1123, 0.0
      %v1134 = vadd.f32 %v1132, %v1133
      %v1135 = vsel %vm817, %v1124, 0.0
      %v1136 = vadd.f32 %v1134, %v1135
      %v1137 = vsel %vm817, %v1125, 0.0
      %v1138 = vadd.f32 %v1136, %v1137
      %v1139 = vsel %vm817, %v1126, 0.0
      %v1140 = vadd.f32 %v1138, %v1139
      %v1141 = vsel %vm817, %v1127, 0.0
      %v1142 = vadd.f32 %v1140, %v1141
      %v1143 = vrot.slane %v1142, 4
      %v1144 = vadd.f32 %v1142, %v1143
      %v1145 = vrot.slane %v1144, 2
      %v1146 = vadd.f32 %v1144, %v1145
      %v1147 = vrot.slane %v1146, 1
      %v1148 = vadd.f32 %v1146, %v1147
      %vm1149 = vcmask 1040384
      %v1150 = vsel %vm1149, %v1119, %v1148
      %vm1151 = vcmask 58368
      %1152 = vst.msk [vmem:[%s262] sm:$0x3] %vm1151, %v1150
      %s1153 = smul.u32 8, %s22
      %p1154 = scmp.lt.s32.totalorder %s21, 1
      %s1155 = scalar_select %p1154, %s21, 1
      %p1156 = scmp.lt.s32.totalorder %s1153, 7
      %s1157 = scalar_select %p1156, %s1153, 7
      %s1158 = smul.addr %s1155, 8
      %s1159 = sadd.s32 %s1157, %s1158
      %s1160 = smul.addr %s1159, 4
      %s1161 = scalar_lea.vmem %s4, %s1160
      %s1162 = sadd.s32 %s21, %s22
      %p1163 = scmp.lt.s32.totalorder %s1162, 1
      %s1164 = scalar_select %p1163, %s1162, 1
      %s1165 = smul.addr %s1164, 2
      %s1166 = scalar_lea.vmem %s5, %s1165
      // Predicated region
      $region45: #{down_forward.3} parent=35 // pred_check
        %p1167 = pneg %p138
      $region46: #{down_forward.3} parent=35 // pred_check_branch
        %1169 = sbr.rel (%p1167) target = $region48
      $region47: #{down_forward.3} parent=35 // pred_region
        %s1170 = smul.u32 8, %s22
      $region48: #{down_forward.3} parent=35 // pred_fallthru
        _
      // Predicated region
      $region49: #{down_forward.3} parent=35 // pred_check
        %p1171 = pneg %p166
      $region50: #{down_forward.3} parent=35 // pred_check_branch
        %1173 = sbr.rel (%p1171) target = $region52
      $region51: #{down_forward.3} parent=35 // pred_region
        %s1174 = sadd.s32 %s21, %s22
      $region52: #{down_forward.3} parent=35 // pred_fallthru
        _
    $region36: #{down_forward.3} parent=5 // pred_fallthru
      _
    %p1175 = scmp.le.s32.totalorder 2, %s12
    // Predicated region
    $region53: #{down_forward.3} parent=5 // pred_check
      %p1176 = pneg %p1175
    $region54: #{down_forward.3} parent=5 // pred_check_branch
      %1178 = sbr.rel (%p1176) target = $region56
    $region55: #{down_forward.3} parent=5 // pred_region
      %s1179 = ssub.s32 %s12, 2
      // Predicated region
      $region57: #{down_forward.3} parent=55 // pred_check
        %p1180 = pneg %p144
      $region58: #{down_forward.3} parent=55 // pred_check_branch
        %1182 = sbr.rel (%p1180) target = $region60
      $region59: #{down_forward.3} parent=55 // pred_region
        %s1183 = smul.u32 8, %s24
        %p1184 = scmp.lt.s32.totalorder %s23, 1
        %s1185 = scalar_select %p1184, %s23, 1
        %p1186 = scmp.lt.s32.totalorder %s1183, 7
        %s1187 = scalar_select %p1186, %s1183, 7
        %s1188 = smul.addr %s1185, 8
        %s1189 = sadd.s32 %s1187, %s1188
        %s1190 = smul.addr %s1189, 4
        %s1191 = scalar_lea.vmem %s4, %s1190
      $region60: #{down_forward.3} parent=55 // pred_fallthru
        _
      // Predicated region
      $region61: #{down_forward.3} parent=55 // pred_check
        %p1192 = pneg %p172
      $region62: #{down_forward.3} parent=55 // pred_check_branch
        %1194 = sbr.rel (%p1192) target = $region64
      $region63: #{down_forward.3} parent=55 // pred_region
        %s1195 = sadd.s32 %s23, %s24
        %p1196 = scmp.lt.s32.totalorder %s1195, 1
        %s1197 = scalar_select %p1196, %s1195, 1
        %s1198 = smul.addr %s1197, 2
        %s1199 = scalar_lea.vmem %s5, %s1198
      $region64: #{down_forward.3} parent=55 // pred_fallthru
        _
    $region56: #{down_forward.3} parent=5 // pred_fallthru
      _
  $region6: #{down_forward.3} parent=0 // loop_footer
    %s16 = sadd.s32 1, %s12
  $region7: #{down_forward.3} parent=0 // loop_footer_branch
    %11 = sbr.rel target = $region3
  $region8: #{down_forward.3} parent=0 // loop_exit
    _

</llo_original>
